<compile_context>
chip_gen: v7x
topology: tpu7x:2x2x1
jax: 0.10.0
libtpu: 0.0.40
codegen_flags: <defaults>
</compile_context>

<pallas_src>
import jax
import jax.numpy as jnp
from jax.experimental import pallas as pl
from jax.experimental.pallas import tpu as pltpu

LANE = 128  # padded width for the hidden / logit activations (lane-dense)


def _round_up(n, m):
    return ((n + m - 1) // m) * m


def agent_kernel(x_ref, w1_ref, w23_ref, b_ref, o_ref):
    x = x_ref[...]                            # (TB, in_size) f32

    w1 = w1_ref[...]                          # (in_size, 128) padded layer1
    w2 = w23_ref[0 * LANE:1 * LANE, :]        # (128, 128)     padded layer2
    w3 = w23_ref[1 * LANE:2 * LANE, :]        # (128, 128)     padded layer3
    b1 = b_ref[0:1, :]
    b2 = b_ref[1:2, :]
    b3 = b_ref[2:3, :]                        # padded logit lanes hold -1e30

    # layer1 + ReLU  (MXU contracts over K = in_size directly)
    h = jnp.maximum(jnp.dot(x, w1, preferred_element_type=jnp.float32) + b1, 0.0)
    # layer2 + ReLU
    h = jnp.maximum(jnp.dot(h, w2, preferred_element_type=jnp.float32) + b2, 0.0)
    # layer3 (logits); padded output lanes end up at ~-1e30
    logits = jnp.dot(h, w3, preferred_element_type=jnp.float32) + b3

    # softmax over the feature axis (padded lanes -> exp(-huge) == 0)
    m = jnp.max(logits, axis=-1, keepdims=True)
    e = jnp.exp(logits - m)
    denom = jnp.sum(e, axis=-1, keepdims=True)
    probs = e / denom                         # exact divide (rows sum to 1)

    # Store only the real output lanes -> narrow (TB, output_size) writeback.
    o_ref[...] = probs[:, :o_ref.shape[-1]].astype(o_ref.dtype)


def agent_model_forward(x, w1_packed, w23_packed, b_packed, output_size,
                        *, block_batch=512):
    """x: (B, input_size) f32 -> (B, output_size) softmax probabilities."""
    B, in_size = x.shape
    B8 = _round_up(B, 8)                      # pad only to a sublane multiple

    # Grid sizing: single step for small batches; otherwise an even number of
    # steps so the parallel batch axis balances across v7x's 2 TensorCores.
    num_steps = pl.cdiv(B8, block_batch)
    if num_steps > 1 and num_steps % 2 == 1:
        num_steps += 1
    TB = _round_up(pl.cdiv(B8, num_steps), 8)
    num_blocks = pl.cdiv(B8, TB)              # final block may be ragged

    xp = x.astype(jnp.float32)
    if B8 != B:
        xp = jnp.pad(xp, ((0, B8 - B), (0, 0)))   # <= 7 tiny zero rows

    out = pl.pallas_call(
        agent_kernel,
        out_shape=jax.ShapeDtypeStruct((B8, output_size), jnp.float32),
        grid=(num_blocks,),
        in_specs=[
            pl.BlockSpec((TB, in_size), lambda i: (i, 0)),        # x tile
            pl.BlockSpec((in_size, LANE), lambda i: (0, 0)),      # w1, resident
            pl.BlockSpec((2 * LANE, LANE), lambda i: (0, 0)),     # w2|w3, resident
            pl.BlockSpec((8, LANE), lambda i: (0, 0)),            # biases, resident
        ],
        out_specs=pl.BlockSpec((TB, output_size), lambda i: (i, 0)),
        compiler_params=pltpu.CompilerParams(
            dimension_semantics=("parallel",)),
    )(xp, w1_packed, w23_packed, b_packed)

    return out[:B] if B8 != B else out


def init_params(key, input_size=10, hidden_size=64, output_size=2):
    """PyTorch nn.Linear-style init: uniform(+/- 1/sqrt(fan_in)).

    Weights stored (in_features, out_features); biases 1-D (out_features,).
    """
    ks = jax.random.split(key, 6)

    def linear(kw, kb, fan_in, fan_out):
        bound = 1.0 / jnp.sqrt(float(fan_in))
        w = jax.random.uniform(kw, (fan_in, fan_out), jnp.float32, -bound, bound)
        b = jax.random.uniform(kb, (fan_out,), jnp.float32, -bound, bound)
        return w, b

    w1, b1 = linear(ks[0], ks[1], input_size, hidden_size)
    w2, b2 = linear(ks[2], ks[3], hidden_size, hidden_size)
    w3, b3 = linear(ks[4], ks[5], hidden_size, output_size)
    return (w1, b1, w2, b2, w3, b3)


def pack_params(params, input_size, hidden_size, output_size):
    """Pack the 6 Linear params into lane-dense, VMEM-resident buffers."""
    w1, b1, w2, b2, w3, b3 = params

    w1p = jnp.zeros((input_size, LANE), jnp.float32)
    w1p = w1p.at[:, 0:hidden_size].set(w1)

    w23 = jnp.zeros((2 * LANE, LANE), jnp.float32)
    w23 = w23.at[0:hidden_size, 0:hidden_size].set(w2)
    w23 = w23.at[LANE:LANE + hidden_size, 0:output_size].set(w3)

    bp = jnp.zeros((8, LANE), jnp.float32)
    bp = bp.at[0, 0:hidden_size].set(b1)
    bp = bp.at[1, 0:hidden_size].set(b2)
    # Padded logit lanes get a huge negative bias so softmax assigns them ~0.
    bp = bp.at[2].set(jnp.full((LANE,), -1e30, jnp.float32))
    bp = bp.at[2, 0:output_size].set(b3)
    return w1p, w23, bp


def reference_forward(x, params):
    """Pure-JAX reference on the unpadded parameters."""
    w1, b1, w2, b2, w3, b3 = params
    h = jnp.maximum(x @ w1 + b1, 0.0)
    h = jnp.maximum(h @ w2 + b2, 0.0)
    return jax.nn.softmax(h @ w3 + b3, axis=1)


if __name__ == "__main__":
    key = jax.random.PRNGKey(0)
    k_x, k_p = jax.random.split(key)

    batch, input_size, hidden_size, output_size = 300, 10, 64, 2
    x = jax.random.normal(k_x, (batch, input_size), dtype=jnp.float32)

    params = init_params(k_p, input_size, hidden_size, output_size)
    w1p, w23p, bp = pack_params(params, input_size, hidden_size, output_size)
    ref = reference_forward(x, params)

    # Path 1 (default): small batch -> single grid step, TB = round_up(300, 8).
    out = agent_model_forward(x, w1p, w23p, bp, output_size)
    out = jax.block_until_ready(out)
    assert out.shape == (batch, output_size)
    assert jnp.allclose(out, ref, atol=2e-3, rtol=2e-3), "mismatch vs reference"
    assert jnp.allclose(jnp.sum(out, axis=1), 1.0, atol=1e-5), \
        "softmax rows must sum to 1"

    # Path 2: force a multi-step grid with a ragged final block
    # (B8=304, block_batch=96 -> TB=80, grid=(4,)).
    out2 = agent_model_forward(x, w1p, w23p, bp, output_size, block_batch=96)
    out2 = jax.block_until_ready(out2)
    assert out2.shape == (batch, output_size)
    assert jnp.allclose(out2, ref, atol=2e-3, rtol=2e-3), "mismatch (multi-step)"

    print("KERNEL_OK")
</pallas_src>

<mosaic_0001>
module attributes {stable_mosaic.version = 11 : i64} {
  func.func @agent_kernel(%arg0: i32, %arg1: memref<304x10xf32, #tpu.memory_space<vmem>>, %arg2: memref<10x128xf32, #tpu.memory_space<vmem>>, %arg3: memref<256x128xf32, #tpu.memory_space<vmem>>, %arg4: memref<8x128xf32, #tpu.memory_space<vmem>>, %arg5: memref<304x2xf32, #tpu.memory_space<vmem>>) attributes {dimension_semantics = [#tpu.dimension_semantics<parallel>], iteration_bounds = array<i64: 1>, scalar_prefetch = 0 : i64, scratch_operands = 0 : i64, tpu.core_type = #tpu.core_type<tc>, window_params = [{transform_indices = @transform_0, window_bounds = array<i64: 304, 10>}, {pipeline_mode = #tpu.pipeline_mode<synchronous>, transform_indices = @transform_1, window_bounds = array<i64: 10, 128>}, {pipeline_mode = #tpu.pipeline_mode<synchronous>, transform_indices = @transform_2, window_bounds = array<i64: 256, 128>}, {pipeline_mode = #tpu.pipeline_mode<synchronous>, transform_indices = @transform_3, window_bounds = array<i64: 8, 128>}, {transform_indices = @transform_4, window_bounds = array<i64: 304, 2>}]} {
    %c0 = arith.constant 0 : index
    %c0_0 = arith.constant 0 : index
    %0 = vector.load %arg1[%c0, %c0_0] : memref<304x10xf32, #tpu.memory_space<vmem>>, vector<304x10xf32>
    %c0_1 = arith.constant 0 : index
    %c0_2 = arith.constant 0 : index
    %1 = vector.load %arg2[%c0_1, %c0_2] : memref<10x128xf32, #tpu.memory_space<vmem>>, vector<10x128xf32>
    %c0_3 = arith.constant 0 : index
    %c0_4 = arith.constant 0 : index
    %2 = vector.load %arg3[%c0_3, %c0_4] : memref<256x128xf32, #tpu.memory_space<vmem>>, vector<128x128xf32>
    %c128 = arith.constant 128 : index
    %c0_5 = arith.constant 0 : index
    %3 = vector.load %arg3[%c128, %c0_5] : memref<256x128xf32, #tpu.memory_space<vmem>>, vector<128x128xf32>
    %c0_6 = arith.constant 0 : index
    %c0_7 = arith.constant 0 : index
    %4 = vector.load %arg4[%c0_6, %c0_7] : memref<8x128xf32, #tpu.memory_space<vmem>>, vector<1x128xf32>
    %c1 = arith.constant 1 : index
    %c0_8 = arith.constant 0 : index
    %5 = vector.load %arg4[%c1, %c0_8] : memref<8x128xf32, #tpu.memory_space<vmem>>, vector<1x128xf32>
    %c2 = arith.constant 2 : index
    %c0_9 = arith.constant 0 : index
    %6 = vector.load %arg4[%c2, %c0_9] : memref<8x128xf32, #tpu.memory_space<vmem>>, vector<1x128xf32>
    %cst = arith.constant dense<0.000000e+00> : vector<304x128xf32>
    %7 = tpu.matmul %0, %1, %cst {dimension_numbers = #tpu.dot_dimension_numbers<[1], [0], [0], [1], [0, 0, 1, 1], [], []>} : vector<304x10xf32>, vector<10x128xf32>, vector<304x128xf32> -> vector<304x128xf32>
    %8 = vector.broadcast %4 : vector<1x128xf32> to vector<304x128xf32>
    %9 = arith.addf %7, %8 : vector<304x128xf32>
    %cst_10 = arith.constant 0.000000e+00 : f32
    %10 = vector.broadcast %cst_10 : f32 to vector<304x128xf32>
    %11 = arith.maximumf %9, %10 : vector<304x128xf32>
    %cst_11 = arith.constant dense<0.000000e+00> : vector<304x128xf32>
    %12 = tpu.matmul %11, %2, %cst_11 {dimension_numbers = #tpu.dot_dimension_numbers<[1], [0], [0], [1], [0, 0, 1, 1], [], []>} : vector<304x128xf32>, vector<128x128xf32>, vector<304x128xf32> -> vector<304x128xf32>
    %13 = vector.broadcast %5 : vector<1x128xf32> to vector<304x128xf32>
    %14 = arith.addf %12, %13 : vector<304x128xf32>
    %cst_12 = arith.constant 0.000000e+00 : f32
    %15 = vector.broadcast %cst_12 : f32 to vector<304x128xf32>
    %16 = arith.maximumf %14, %15 : vector<304x128xf32>
    %cst_13 = arith.constant dense<0.000000e+00> : vector<304x128xf32>
    %17 = tpu.matmul %16, %3, %cst_13 {dimension_numbers = #tpu.dot_dimension_numbers<[1], [0], [0], [1], [0, 0, 1, 1], [], []>} : vector<304x128xf32>, vector<128x128xf32>, vector<304x128xf32> -> vector<304x128xf32>
    %18 = vector.broadcast %6 : vector<1x128xf32> to vector<304x128xf32>
    %19 = arith.addf %17, %18 : vector<304x128xf32>
    %cst_14 = arith.constant dense<0xFF800000> : vector<304xf32>
    %20 = vector.multi_reduction <maximumf>, %19, %cst_14 [1] : vector<304x128xf32> to vector<304xf32>
    %21 = vector.shape_cast %20 : vector<304xf32> to vector<304x1xf32>
    %22 = vector.broadcast %21 : vector<304x1xf32> to vector<304x128xf32>
    %23 = arith.subf %19, %22 : vector<304x128xf32>
    %24 = math.exp %23 : vector<304x128xf32>
    %cst_15 = arith.constant dense<0.000000e+00> : vector<304xf32>
    %25 = vector.multi_reduction <add>, %24, %cst_15 [1] : vector<304x128xf32> to vector<304xf32>
    %26 = vector.shape_cast %25 : vector<304xf32> to vector<304x1xf32>
    %27 = vector.broadcast %26 : vector<304x1xf32> to vector<304x128xf32>
    %28 = arith.divf %24, %27 : vector<304x128xf32>
    %29 = vector.extract_strided_slice %28 {offsets = [0, 0], sizes = [304, 2], strides = [1, 1]} : vector<304x128xf32> to vector<304x2xf32>
    %c0_16 = arith.constant 0 : index
    %c0_17 = arith.constant 0 : index
    %30 = vector.load %arg5[%c0_16, %c0_17] : memref<304x2xf32, #tpu.memory_space<vmem>>, vector<304x2xf32>
    tpu.vector_store %arg5[%c0_16, %c0_17], %29 {strides = array<i32>} : memref<304x2xf32, #tpu.memory_space<vmem>>, vector<304x2xf32>,
    return
  }
  func.func @transform_0(%arg0: i32) -> (i32, i32) {
    %c0_i32 = arith.constant 0 : i32
    %c0_i32_0 = arith.constant 0 : i32
    return %arg0, %c0_i32 : i32, i32
  }
  func.func @transform_1(%arg0: i32) -> (i32, i32) {
    %c0_i32 = arith.constant 0 : i32
    %c0_i32_0 = arith.constant 0 : i32
    %c0_i32_1 = arith.constant 0 : i32
    return %c0_i32, %c0_i32_0 : i32, i32
  }
  func.func @transform_2(%arg0: i32) -> (i32, i32) {
    %c0_i32 = arith.constant 0 : i32
    %c0_i32_0 = arith.constant 0 : i32
    %c0_i32_1 = arith.constant 0 : i32
    return %c0_i32, %c0_i32_0 : i32, i32
  }
  func.func @transform_3(%arg0: i32) -> (i32, i32) {
    %c0_i32 = arith.constant 0 : i32
    %c0_i32_0 = arith.constant 0 : i32
    %c0_i32_1 = arith.constant 0 : i32
    return %c0_i32, %c0_i32_0 : i32, i32
  }
  func.func @transform_4(%arg0: i32) -> (i32, i32) {
    %c0_i32 = arith.constant 0 : i32
    %c0_i32_0 = arith.constant 0 : i32
    return %arg0, %c0_i32 : i32, i32
  }
}

</mosaic_0001>

<llo_original>
// kernel: tpu_custom_call.1
$region0: #{tpu_custom_call.1}
  #allocation0 [shape = 'u32[]', space=smem, size = 0x4, offset = 0x4, fixed_abs, tag = 'smem constant byte address 0x4 - core index']
  #allocation1 [shape = 'u32[144,128]{1,0:T(1,128)}', space=vmem, size = 0x12000, scoped, tag = 'internal scratch']
  %s0 = inlined_call_operand.vmem [shape: f32[304,10], index: 0, kind: input, shape index: {}]
  %s1 = inlined_call_operand.vmem [shape: f32[10,128], index: 1, kind: input, shape index: {}]
  %s2 = inlined_call_operand.vmem [shape: f32[256,128], index: 2, kind: input, shape index: {}]
  %s3 = inlined_call_operand.vmem [shape: f32[8,128], index: 3, kind: input, shape index: {}]
  %s4 = inlined_call_operand.vmem [shape: f32[304,2], index: 4, kind: output, shape index: {}]
  %s5 = sld [smem:[#allocation0]]
  $region26: #{tpu_custom_call.1} parent=0
    _
  %s7 = ssub.s32 1, %s5
  %s8 = scalar_select 0, %s7, %s5
  // Predicated region
  $region2: #{tpu_custom_call.1} parent=0 // pred_check
    _
  $region3: #{tpu_custom_call.1} parent=0 // pred_check_branch
    %10 = sbr.rel (0) target = $region5
  $region4: #{tpu_custom_call.1} parent=0 // pred_region
    _
  $region5: #{tpu_custom_call.1} parent=0 // pred_fallthru
    _
  // Predicated region
  $region6: #{tpu_custom_call.1} parent=0 // pred_check
    _
  $region7: #{tpu_custom_call.1} parent=0 // pred_check_branch
    %12 = sbr.rel (0) target = $region9
  $region8: #{tpu_custom_call.1} parent=0 // pred_region
    _
  $region9: #{tpu_custom_call.1} parent=0 // pred_fallthru
    _
  // Predicated region
  $region10: #{tpu_custom_call.1} parent=0 // pred_check
    _
  $region11: #{tpu_custom_call.1} parent=0 // pred_check_branch
    %14 = sbr.rel (0) target = $region13
  $region12: #{tpu_custom_call.1} parent=0 // pred_region
    _
  $region13: #{tpu_custom_call.1} parent=0 // pred_fallthru
    _
  // Predicated region
  $region14: #{tpu_custom_call.1} parent=0 // pred_check
    _
  $region15: #{tpu_custom_call.1} parent=0 // pred_check_branch
    %16 = sbr.rel (0) target = $region17
  $region16: #{tpu_custom_call.1} parent=0 // pred_region
    _
  $region17: #{tpu_custom_call.1} parent=0 // pred_fallthru
    _
  %v17 = vld [vmem:[%s0] sm:$0xff]
  %v18 = vld [vmem:[%s0 + $0x8] sm:$0xff]
  %v19 = vld [vmem:[%s0 + $0x10] sm:$0xff]
  %v20 = vld [vmem:[%s0 + $0x18] sm:$0xff]
  %v21 = vld [vmem:[%s0 + $0x20] sm:$0xff]
  %v22 = vld [vmem:[%s0 + $0x28] sm:$0xff]
  %v23 = vld [vmem:[%s0 + $0x30] sm:$0xff]
  %v24 = vld [vmem:[%s0 + $0x38] sm:$0xff]
  %v25 = vld [vmem:[%s0 + $0x40] sm:$0xff]
  %v26 = vld [vmem:[%s0 + $0x48] sm:$0xff]
  %v27 = vld [vmem:[%s0 + $0x50] sm:$0xff]
  %v28 = vld [vmem:[%s0 + $0x58] sm:$0xff]
  %v29 = vld [vmem:[%s0 + $0x60] sm:$0xff]
  %v30 = vld [vmem:[%s0 + $0x68] sm:$0xff]
  %v31 = vld [vmem:[%s0 + $0x70] sm:$0xff]
  %v32 = vld [vmem:[%s0 + $0x78] sm:$0xff]
  %v33 = vld [vmem:[%s0 + $0x80] sm:$0xff]
  %v34 = vld [vmem:[%s0 + $0x88] sm:$0xff]
  %v35 = vld [vmem:[%s0 + $0x90] sm:$0xff]
  %v36 = vld [vmem:[%s0 + $0x98] sm:$0xff]
  %v37 = vld [vmem:[%s0 + $0xa0] sm:$0xff]
  %v38 = vld [vmem:[%s0 + $0xa8] sm:$0xff]
  %v39 = vld [vmem:[%s0 + $0xb0] sm:$0xff]
  %v40 = vld [vmem:[%s0 + $0xb8] sm:$0xff]
  %v41 = vld [vmem:[%s0 + $0xc0] sm:$0xff]
  %v42 = vld [vmem:[%s0 + $0xc8] sm:$0xff]
  %v43 = vld [vmem:[%s0 + $0xd0] sm:$0xff]
  %v44 = vld [vmem:[%s0 + $0xd8] sm:$0xff]
  %v45 = vld [vmem:[%s0 + $0xe0] sm:$0xff]
  %v46 = vld [vmem:[%s0 + $0xe8] sm:$0xff]
  %v47 = vld [vmem:[%s0 + $0xf0] sm:$0xff]
  %v48 = vld [vmem:[%s0 + $0xf8] sm:$0xff]
  %v49 = vld [vmem:[%s0 + $0x100] sm:$0xff]
  %v50 = vld [vmem:[%s0 + $0x108] sm:$0xff]
  %v51 = vld [vmem:[%s0 + $0x110] sm:$0xff]
  %v52 = vld [vmem:[%s0 + $0x118] sm:$0xff]
  %v53 = vld [vmem:[%s0 + $0x120] sm:$0xff]
  %v54 = vld [vmem:[%s0 + $0x128] sm:$0xff]
  %v55 = vld [vmem:[%s1] sm:$0xff]
  %v56 = vld [vmem:[%s1 + $0x8] sm:$0x3]
  %v57 = vld [vmem:[%s2] sm:$0xff]
  %v58 = vld [vmem:[%s2 + $0x8] sm:$0xff]
  %v59 = vld [vmem:[%s2 + $0x10] sm:$0xff]
  %v60 = vld [vmem:[%s2 + $0x18] sm:$0xff]
  %v61 = vld [vmem:[%s2 + $0x20] sm:$0xff]
  %v62 = vld [vmem:[%s2 + $0x28] sm:$0xff]
  %v63 = vld [vmem:[%s2 + $0x30] sm:$0xff]
  %v64 = vld [vmem:[%s2 + $0x38] sm:$0xff]
  %v65 = vld [vmem:[%s2 + $0x40] sm:$0xff]
  %v66 = vld [vmem:[%s2 + $0x48] sm:$0xff]
  %v67 = vld [vmem:[%s2 + $0x50] sm:$0xff]
  %v68 = vld [vmem:[%s2 + $0x58] sm:$0xff]
  %v69 = vld [vmem:[%s2 + $0x60] sm:$0xff]
  %v70 = vld [vmem:[%s2 + $0x68] sm:$0xff]
  %v71 = vld [vmem:[%s2 + $0x70] sm:$0xff]
  %v72 = vld [vmem:[%s2 + $0x78] sm:$0xff]
  %v73 = vld [vmem:[%s2 + $0x80] sm:$0xff]
  %v74 = vld [vmem:[%s2 + $0x88] sm:$0xff]
  %v75 = vld [vmem:[%s2 + $0x90] sm:$0xff]
  %v76 = vld [vmem:[%s2 + $0x98] sm:$0xff]
  %v77 = vld [vmem:[%s2 + $0xa0] sm:$0xff]
  %v78 = vld [vmem:[%s2 + $0xa8] sm:$0xff]
  %v79 = vld [vmem:[%s2 + $0xb0] sm:$0xff]
  %v80 = vld [vmem:[%s2 + $0xb8] sm:$0xff]
  %v81 = vld [vmem:[%s2 + $0xc0] sm:$0xff]
  %v82 = vld [vmem:[%s2 + $0xc8] sm:$0xff]
  %v83 = vld [vmem:[%s2 + $0xd0] sm:$0xff]
  %v84 = vld [vmem:[%s2 + $0xd8] sm:$0xff]
  %v85 = vld [vmem:[%s2 + $0xe0] sm:$0xff]
  %v86 = vld [vmem:[%s2 + $0xe8] sm:$0xff]
  %v87 = vld [vmem:[%s2 + $0xf0] sm:$0xff]
  %v88 = vld [vmem:[%s2 + $0xf8] sm:$0xff]
  %v89 = vld [vmem:[%s3] sm:$0x1]
  %v90 = vld [vmem:[%s3 + $0x1] sm:$0x1]
  %v91 = vld [vmem:[%s3 + $0x2] sm:$0x1]
  %v92 = vlaneseq
  %v93 = vshrl.u32 %v92, 7
  %v94 = vsub.s32 0, %v93
  %v95 = vrot.slane %v89, %v94
  %vm96 = vcmask 80896
  %v98 = vsel %vm96, %v17, 0
  %v101 = vsel %vm96, %v18, 0
  %v104 = vsel %vm96, %v19, 0
  %v107 = vsel %vm96, %v20, 0
  %v110 = vsel %vm96, %v21, 0
  %v113 = vsel %vm96, %v22, 0
  %v116 = vsel %vm96, %v23, 0
  %v119 = vsel %vm96, %v24, 0
  %v122 = vsel %vm96, %v25, 0
  %v125 = vsel %vm96, %v26, 0
  %v128 = vsel %vm96, %v27, 0
  %v131 = vsel %vm96, %v28, 0
  %v134 = vsel %vm96, %v29, 0
  %v137 = vsel %vm96, %v30, 0
  %v140 = vsel %vm96, %v31, 0
  %v143 = vsel %vm96, %v32, 0
  %v146 = vsel %vm96, %v33, 0
  %v149 = vsel %vm96, %v34, 0
  %v152 = vsel %vm96, %v35, 0
  %v155 = vsel %vm96, %v36, 0
  %v158 = vsel %vm96, %v37, 0
  %v161 = vsel %vm96, %v38, 0
  %v164 = vsel %vm96, %v39, 0
  %v167 = vsel %vm96, %v40, 0
  %v170 = vsel %vm96, %v41, 0
  %v173 = vsel %vm96, %v42, 0
  %v176 = vsel %vm96, %v43, 0
  %v179 = vsel %vm96, %v44, 0
  %v182 = vsel %vm96, %v45, 0
  %v185 = vsel %vm96, %v46, 0
  %v188 = vsel %vm96, %v47, 0
  %v191 = vsel %vm96, %v48, 0
  %v194 = vsel %vm96, %v49, 0
  %v197 = vsel %vm96, %v50, 0
  %v200 = vsel %vm96, %v51, 0
  %v203 = vsel %vm96, %v52, 0
  %v206 = vsel %vm96, %v53, 0
  %v209 = vsel %vm96, %v54, 0
  %vm211 = vcmask 1041408
  %v213 = vsel %vm211, %v56, 0
  %215 = vmatprep.subr.mxu0 0.0
  %216 = vmatpush1.msra.mxu0 %v55
  %217 = vmatprep.subr.mxu0 0.0
  %218 = vmatpush1.msra.mxu0 %v213
  %219 = vmatprep.subr.mxu0 0.0
  %220 = vmatpush1.msra.mxu0 0.0
  %221 = vmatprep.subr.mxu0 0.0
  %222 = vmatpush1.msra.mxu0 0.0
  %223 = vmatprep.subr.mxu0 0.0
  %224 = vmatpush1.msra.mxu0 0.0
  %225 = vmatprep.subr.mxu0 0.0
  %226 = vmatpush1.msra.mxu0 0.0
  %227 = vmatprep.subr.mxu0 0.0
  %228 = vmatpush1.msra.mxu0 0.0
  %229 = vmatprep.subr.mxu0 0.0
  %230 = vmatpush1.msra.mxu0 0.0
  %231 = vmatprep.subr.mxu0 0.0
  %232 = vmatpush1.msra.mxu0 0.0
  %233 = vmatprep.subr.mxu0 0.0
  %234 = vmatpush1.msra.mxu0 0.0
  %235 = vmatprep.subr.mxu0 0.0
  %236 = vmatpush1.msra.mxu0 0.0
  %237 = vmatprep.subr.mxu0 0.0
  %238 = vmatpush1.msra.mxu0 0.0
  %239 = vmatprep.subr.mxu0 0.0
  %240 = vmatpush1.msra.mxu0 0.0
  %241 = vmatprep.subr.mxu0 0.0
  %242 = vmatpush1.msra.mxu0 0.0
  %243 = vmatprep.subr.mxu0 0.0
  %244 = vmatpush1.msra.mxu0 0.0
  %245 = vmatprep.subr.mxu0 0.0
  %246 = vmatpush1.msra.mxu0 0.0
  %247 = vmatprep.subr.mxu0 0.0
  %248 = vmatpush1.msra.mxu0 0.0
  %249 = vmatprep.subr.mxu0 0.0
  %250 = vmatpush1.msra.mxu0 0.0
  %251 = vmatprep.subr.mxu0 0.0
  %252 = vmatpush1.msra.mxu0 0.0
  %253 = vmatprep.subr.mxu0 0.0
  %254 = vmatpush1.msra.mxu0 0.0
  %255 = vmatprep.subr.mxu0 0.0
  %256 = vmatpush1.msra.mxu0 0.0
  %257 = vmatprep.subr.mxu0 0.0
  %258 = vmatpush1.msra.mxu0 0.0
  %259 = vmatprep.subr.mxu0 0.0
  %260 = vmatpush1.msra.mxu0 0.0
  %261 = vmatprep.subr.mxu0 0.0
  %262 = vmatpush1.msra.mxu0 0.0
  %263 = vmatprep.subr.mxu0 0.0
  %264 = vmatpush1.msra.mxu0 0.0
  %265 = vmatprep.subr.mxu0 0.0
  %266 = vmatpush1.msra.mxu0 0.0
  %267 = vmatprep.subr.mxu0 0.0
  %268 = vmatpush1.msra.mxu0 0.0
  %269 = vmatprep.subr.mxu0 0.0
  %270 = vmatpush1.msra.mxu0 0.0
  %271 = vmatprep.subr.mxu0 0.0
  %272 = vmatpush1.msra.mxu0 0.0
  %273 = vmatprep.subr.mxu0 0.0
  %274 = vmatpush1.msra.mxu0 0.0
  %275 = vmatprep.subr.mxu0 0.0
  %276 = vmatpush1.msra.mxu0 0.0
  %277 = vmatprep.subr.mxu0 0.0
  %278 = vmatpush1.msra.mxu0 0.0
  %279 = vmatprep.mubr.f32.mxu0 0.0
  %280 = vmatmul.mubr.f32.gmra.mrb[0].mxu0 %v98
  %v281 = vpop.f32.mrb[0].mxu0
  %v282 = vadd.f32 %v95, %v281
  %v283 = vpop.f32.mrb[0].mxu0
  %284 = vmatprep.mubr.f32.mxu0 0.0
  %285 = vmatmul.mubr.f32.gmra.mrb[0].mxu0 %v101
  %v286 = vpop.f32.mrb[0].mxu0
  %v287 = vadd.f32 %v95, %v286
  %v288 = vpop.f32.mrb[0].mxu0
  %289 = vmatprep.mubr.f32.mxu0 0.0
  %290 = vmatmul.mubr.f32.gmra.mrb[0].mxu0 %v104
  %v291 = vpop.f32.mrb[0].mxu0
  %v292 = vadd.f32 %v95, %v291
  %v293 = vpop.f32.mrb[0].mxu0
  %294 = vmatprep.mubr.f32.mxu0 0.0
  %295 = vmatmul.mubr.f32.gmra.mrb[0].mxu0 %v107
  %v296 = vpop.f32.mrb[0].mxu0
  %v297 = vadd.f32 %v95, %v296
  %v298 = vpop.f32.mrb[0].mxu0
  %299 = vmatprep.mubr.f32.mxu0 0.0
  %300 = vmatmul.mubr.f32.gmra.mrb[0].mxu0 %v110
  %v301 = vpop.f32.mrb[0].mxu0
  %v302 = vadd.f32 %v95, %v301
  %v303 = vpop.f32.mrb[0].mxu0
  %304 = vmatprep.mubr.f32.mxu0 0.0
  %305 = vmatmul.mubr.f32.gmra.mrb[0].mxu0 %v113
  %v306 = vpop.f32.mrb[0].mxu0
  %v307 = vadd.f32 %v95, %v306
  %v308 = vpop.f32.mrb[0].mxu0
  %309 = vmatprep.mubr.f32.mxu0 0.0
  %310 = vmatmul.mubr.f32.gmra.mrb[0].mxu0 %v116
  %v311 = vpop.f32.mrb[0].mxu0
  %v312 = vadd.f32 %v95, %v311
  %v313 = vpop.f32.mrb[0].mxu0
  %314 = vmatprep.mubr.f32.mxu0 0.0
  %315 = vmatmul.mubr.f32.gmra.mrb[0].mxu0 %v119
  %v316 = vpop.f32.mrb[0].mxu0
  %v317 = vadd.f32 %v95, %v316
  %v318 = vpop.f32.mrb[0].mxu0
  %319 = vmatprep.mubr.f32.mxu0 0.0
  %320 = vmatmul.mubr.f32.gmra.mrb[0].mxu0 %v122
  %v321 = vpop.f32.mrb[0].mxu0
  %v322 = vadd.f32 %v95, %v321
  %v323 = vpop.f32.mrb[0].mxu0
  %324 = vmatprep.mubr.f32.mxu0 0.0
  %325 = vmatmul.mubr.f32.gmra.mrb[0].mxu0 %v125
  %v326 = vpop.f32.mrb[0].mxu0
  %v327 = vadd.f32 %v95, %v326
  %v328 = vpop.f32.mrb[0].mxu0
  %329 = vmatprep.mubr.f32.mxu0 0.0
  %330 = vmatmul.mubr.f32.gmra.mrb[0].mxu0 %v128
  %v331 = vpop.f32.mrb[0].mxu0
  %v332 = vadd.f32 %v95, %v331
  %v333 = vpop.f32.mrb[0].mxu0
  %334 = vmatprep.mubr.f32.mxu0 0.0
  %335 = vmatmul.mubr.f32.gmra.mrb[0].mxu0 %v131
  %v336 = vpop.f32.mrb[0].mxu0
  %v337 = vadd.f32 %v95, %v336
  %v338 = vpop.f32.mrb[0].mxu0
  %339 = vmatprep.mubr.f32.mxu0 0.0
  %340 = vmatmul.mubr.f32.gmra.mrb[0].mxu0 %v134
  %v341 = vpop.f32.mrb[0].mxu0
  %v342 = vadd.f32 %v95, %v341
  %v343 = vpop.f32.mrb[0].mxu0
  %344 = vmatprep.mubr.f32.mxu0 0.0
  %345 = vmatmul.mubr.f32.gmra.mrb[0].mxu0 %v137
  %v346 = vpop.f32.mrb[0].mxu0
  %v347 = vadd.f32 %v95, %v346
  %v348 = vpop.f32.mrb[0].mxu0
  %349 = vmatprep.mubr.f32.mxu0 0.0
  %350 = vmatmul.mubr.f32.gmra.mrb[0].mxu0 %v140
  %v351 = vpop.f32.mrb[0].mxu0
  %v352 = vadd.f32 %v95, %v351
  %v353 = vpop.f32.mrb[0].mxu0
  %354 = vmatprep.mubr.f32.mxu0 0.0
  %355 = vmatmul.mubr.f32.gmra.mrb[0].mxu0 %v143
  %v356 = vpop.f32.mrb[0].mxu0
  %v357 = vadd.f32 %v95, %v356
  %v358 = vpop.f32.mrb[0].mxu0
  %359 = vmatprep.mubr.f32.mxu0 0.0
  %360 = vmatmul.mubr.f32.gmra.mrb[0].mxu0 %v146
  %v361 = vpop.f32.mrb[0].mxu0
  %v362 = vadd.f32 %v95, %v361
  %v363 = vpop.f32.mrb[0].mxu0
  %364 = vmatprep.mubr.f32.mxu0 0.0
  %365 = vmatmul.mubr.f32.gmra.mrb[0].mxu0 %v149
  %v366 = vpop.f32.mrb[0].mxu0
  %v367 = vadd.f32 %v95, %v366
  %v368 = vpop.f32.mrb[0].mxu0
  %369 = vmatprep.mubr.f32.mxu0 0.0
  %370 = vmatmul.mubr.f32.gmra.mrb[0].mxu0 %v152
  %v371 = vpop.f32.mrb[0].mxu0
  %v372 = vadd.f32 %v95, %v371
  %v373 = vpop.f32.mrb[0].mxu0
  %374 = vmatprep.mubr.f32.mxu0 0.0
  %375 = vmatmul.mubr.f32.gmra.mrb[0].mxu0 %v155
  %v376 = vpop.f32.mrb[0].mxu0
  %v377 = vadd.f32 %v95, %v376
  %v378 = vpop.f32.mrb[0].mxu0
  %379 = vmatprep.mubr.f32.mxu0 0.0
  %380 = vmatmul.mubr.f32.gmra.mrb[0].mxu0 %v158
  %v381 = vpop.f32.mrb[0].mxu0
  %v382 = vadd.f32 %v95, %v381
  %v383 = vpop.f32.mrb[0].mxu0
  %384 = vmatprep.mubr.f32.mxu0 0.0
  %385 = vmatmul.mubr.f32.gmra.mrb[0].mxu0 %v161
  %v386 = vpop.f32.mrb[0].mxu0
  %v387 = vadd.f32 %v95, %v386
  %v388 = vpop.f32.mrb[0].mxu0
  %389 = vmatprep.mubr.f32.mxu0 0.0
  %390 = vmatmul.mubr.f32.gmra.mrb[0].mxu0 %v164
  %v391 = vpop.f32.mrb[0].mxu0
  %v392 = vadd.f32 %v95, %v391
  %v393 = vpop.f32.mrb[0].mxu0
  %394 = vmatprep.mubr.f32.mxu0 0.0
  %395 = vmatmul.mubr.f32.gmra.mrb[0].mxu0 %v167
  %v396 = vpop.f32.mrb[0].mxu0
  %v397 = vadd.f32 %v95, %v396
  %v398 = vpop.f32.mrb[0].mxu0
  %399 = vmatprep.mubr.f32.mxu0 0.0
  %400 = vmatmul.mubr.f32.gmra.mrb[0].mxu0 %v170
  %v401 = vpop.f32.mrb[0].mxu0
  %v402 = vadd.f32 %v95, %v401
  %v403 = vpop.f32.mrb[0].mxu0
  %404 = vmatprep.mubr.f32.mxu0 0.0
  %405 = vmatmul.mubr.f32.gmra.mrb[0].mxu0 %v173
  %v406 = vpop.f32.mrb[0].mxu0
  %v407 = vadd.f32 %v95, %v406
  %v408 = vpop.f32.mrb[0].mxu0
  %409 = vmatprep.mubr.f32.mxu0 0.0
  %410 = vmatmul.mubr.f32.gmra.mrb[0].mxu0 %v176
  %v411 = vpop.f32.mrb[0].mxu0
  %v412 = vadd.f32 %v95, %v411
  %v413 = vpop.f32.mrb[0].mxu0
  %414 = vmatprep.mubr.f32.mxu0 0.0
  %415 = vmatmul.mubr.f32.gmra.mrb[0].mxu0 %v179
  %v416 = vpop.f32.mrb[0].mxu0
  %v417 = vadd.f32 %v95, %v416
  %v418 = vpop.f32.mrb[0].mxu0
  %419 = vmatprep.mubr.f32.mxu0 0.0
  %420 = vmatmul.mubr.f32.gmra.mrb[0].mxu0 %v182
  %v421 = vpop.f32.mrb[0].mxu0
  %v422 = vadd.f32 %v95, %v421
  %v423 = vpop.f32.mrb[0].mxu0
  %424 = vmatprep.mubr.f32.mxu0 0.0
  %425 = vmatmul.mubr.f32.gmra.mrb[0].mxu0 %v185
  %v426 = vpop.f32.mrb[0].mxu0
  %v427 = vadd.f32 %v95, %v426
  %v428 = vpop.f32.mrb[0].mxu0
  %429 = vmatprep.mubr.f32.mxu0 0.0
  %430 = vmatmul.mubr.f32.gmra.mrb[0].mxu0 %v188
  %v431 = vpop.f32.mrb[0].mxu0
  %v432 = vadd.f32 %v95, %v431
  %v433 = vpop.f32.mrb[0].mxu0
  %434 = vmatprep.mubr.f32.mxu0 0.0
  %435 = vmatmul.mubr.f32.gmra.mrb[0].mxu0 %v191
  %v436 = vpop.f32.mrb[0].mxu0
  %v437 = vadd.f32 %v95, %v436
  %v438 = vpop.f32.mrb[0].mxu0
  %439 = vmatprep.mubr.f32.mxu0 0.0
  %440 = vmatmul.mubr.f32.gmra.mrb[0].mxu0 %v194
  %v441 = vpop.f32.mrb[0].mxu0
  %v442 = vadd.f32 %v95, %v441
  %v443 = vpop.f32.mrb[0].mxu0
  %444 = vmatprep.mubr.f32.mxu0 0.0
  %445 = vmatmul.mubr.f32.gmra.mrb[0].mxu0 %v197
  %v446 = vpop.f32.mrb[0].mxu0
  %v447 = vadd.f32 %v95, %v446
  %v448 = vpop.f32.mrb[0].mxu0
  %449 = vmatprep.mubr.f32.mxu0 0.0
  %450 = vmatmul.mubr.f32.gmra.mrb[0].mxu0 %v200
  %v451 = vpop.f32.mrb[0].mxu0
  %v452 = vadd.f32 %v95, %v451
  %v453 = vpop.f32.mrb[0].mxu0
  %454 = vmatprep.mubr.f32.mxu0 0.0
  %455 = vmatmul.mubr.f32.gmra.mrb[0].mxu0 %v203
  %v456 = vpop.f32.mrb[0].mxu0
  %v457 = vadd.f32 %v95, %v456
  %v458 = vpop.f32.mrb[0].mxu0
  %459 = vmatprep.mubr.f32.mxu0 0.0
  %460 = vmatmul.mubr.f32.gmra.mrb[0].mxu0 %v206
  %v461 = vpop.f32.mrb[0].mxu0
  %v462 = vadd.f32 %v95, %v461
  %v463 = vpop.f32.mrb[0].mxu0
  %464 = vmatprep.mubr.f32.mxu0 0.0
  %465 = vmatmul.mubr.f32.gmra.mrb[0].mxu0 %v209
  %v466 = vpop.f32.mrb[0].mxu0
  %v467 = vadd.f32 %v95, %v466
  %v468 = vpop.f32.mrb[0].mxu0
  %469 = vdwg.mxu0
  %v470 = vmax.f32 %v282, 0.0
  %v471 = vmax.f32 %v287, 0.0
  %v472 = vmax.f32 %v292, 0.0
  %v473 = vmax.f32 %v297, 0.0
  %v474 = vmax.f32 %v302, 0.0
  %v475 = vmax.f32 %v307, 0.0
  %v476 = vmax.f32 %v312, 0.0
  %v477 = vmax.f32 %v317, 0.0
  %v478 = vmax.f32 %v322, 0.0
  %v479 = vmax.f32 %v327, 0.0
  %v480 = vmax.f32 %v332, 0.0
  %v481 = vmax.f32 %v337, 0.0
  %v482 = vmax.f32 %v342, 0.0
  %v483 = vmax.f32 %v347, 0.0
  %v484 = vmax.f32 %v352, 0.0
  %v485 = vmax.f32 %v357, 0.0
  %v486 = vmax.f32 %v362, 0.0
  %v487 = vmax.f32 %v367, 0.0
  %v488 = vmax.f32 %v372, 0.0
  %v489 = vmax.f32 %v377, 0.0
  %v490 = vmax.f32 %v382, 0.0
  %v491 = vmax.f32 %v387, 0.0
  %v492 = vmax.f32 %v392, 0.0
  %v493 = vmax.f32 %v397, 0.0
  %v494 = vmax.f32 %v402, 0.0
  %v495 = vmax.f32 %v407, 0.0
  %v496 = vmax.f32 %v412, 0.0
  %v497 = vmax.f32 %v417, 0.0
  %v498 = vmax.f32 %v422, 0.0
  %v499 = vmax.f32 %v427, 0.0
  %v500 = vmax.f32 %v432, 0.0
  %v501 = vmax.f32 %v437, 0.0
  %v502 = vmax.f32 %v442, 0.0
  %v503 = vmax.f32 %v447, 0.0
  %v504 = vmax.f32 %v452, 0.0
  %v505 = vmax.f32 %v457, 0.0
  %v506 = vmax.f32 %v462, 0.0
  %v507 = vmax.f32 %v467, 0.0
  %v508 = vlaneseq
  %v509 = vshrl.u32 %v508, 7
  %v510 = vsub.s32 0, %v509
  %v511 = vrot.slane %v90, %v510
  %512 = vmatprep.subr.mxu0 0.0
  %513 = vmatpush1.msra.mxu0 %v57
  %514 = vmatprep.subr.mxu0 0.0
  %515 = vmatpush1.msra.mxu0 %v58
  %516 = vmatprep.subr.mxu0 0.0
  %517 = vmatpush1.msra.mxu0 %v59
  %518 = vmatprep.subr.mxu0 0.0
  %519 = vmatpush1.msra.mxu0 %v60
  %520 = vmatprep.subr.mxu0 0.0
  %521 = vmatpush1.msra.mxu0 %v61
  %522 = vmatprep.subr.mxu0 0.0
  %523 = vmatpush1.msra.mxu0 %v62
  %524 = vmatprep.subr.mxu0 0.0
  %525 = vmatpush1.msra.mxu0 %v63
  %526 = vmatprep.subr.mxu0 0.0
  %527 = vmatpush1.msra.mxu0 %v64
  %528 = vmatprep.subr.mxu0 0.0
  %529 = vmatpush1.msra.mxu0 %v65
  %530 = vmatprep.subr.mxu0 0.0
  %531 = vmatpush1.msra.mxu0 %v66
  %532 = vmatprep.subr.mxu0 0.0
  %533 = vmatpush1.msra.mxu0 %v67
  %534 = vmatprep.subr.mxu0 0.0
  %535 = vmatpush1.msra.mxu0 %v68
  %536 = vmatprep.subr.mxu0 0.0
  %537 = vmatpush1.msra.mxu0 %v69
  %538 = vmatprep.subr.mxu0 0.0
  %539 = vmatpush1.msra.mxu0 %v70
  %540 = vmatprep.subr.mxu0 0.0
  %541 = vmatpush1.msra.mxu0 %v71
  %542 = vmatprep.subr.mxu0 0.0
  %543 = vmatpush1.msra.mxu0 %v72
  %544 = vmatprep.subr.mxu0 0.0
  %545 = vmatpush1.msra.mxu0 0.0
  %546 = vmatprep.subr.mxu0 0.0
  %547 = vmatpush1.msra.mxu0 0.0
  %548 = vmatprep.subr.mxu0 0.0
  %549 = vmatpush1.msra.mxu0 0.0
  %550 = vmatprep.subr.mxu0 0.0
  %551 = vmatpush1.msra.mxu0 0.0
  %552 = vmatprep.subr.mxu0 0.0
  %553 = vmatpush1.msra.mxu0 0.0
  %554 = vmatprep.subr.mxu0 0.0
  %555 = vmatpush1.msra.mxu0 0.0
  %556 = vmatprep.subr.mxu0 0.0
  %557 = vmatpush1.msra.mxu0 0.0
  %558 = vmatprep.subr.mxu0 0.0
  %559 = vmatpush1.msra.mxu0 0.0
  %560 = vmatprep.subr.mxu0 0.0
  %561 = vmatpush1.msra.mxu0 0.0
  %562 = vmatprep.subr.mxu0 0.0
  %563 = vmatpush1.msra.mxu0 0.0
  %564 = vmatprep.subr.mxu0 0.0
  %565 = vmatpush1.msra.mxu0 0.0
  %566 = vmatprep.subr.mxu0 0.0
  %567 = vmatpush1.msra.mxu0 0.0
  %568 = vmatprep.subr.mxu0 0.0
  %569 = vmatpush1.msra.mxu0 0.0
  %570 = vmatprep.subr.mxu0 0.0
  %571 = vmatpush1.msra.mxu0 0.0
  %572 = vmatprep.subr.mxu0 0.0
  %573 = vmatpush1.msra.mxu0 0.0
  %574 = vmatprep.subr.mxu0 0.0
  %575 = vmatpush1.msra.mxu0 0.0
  %576 = vmatprep.mubr.f32.mxu0 0.0
  %577 = vmatmul.mubr.f32.gmra.mrb[0].mxu0 %v470
  %v578 = vpop.f32.mrb[0].mxu0
  %v579 = vadd.f32 %v511, %v578
  %v580 = vpop.f32.mrb[0].mxu0
  %581 = vmatprep.mubr.f32.mxu0 0.0
  %582 = vmatmul.mubr.f32.gmra.mrb[0].mxu0 %v471
  %v583 = vpop.f32.mrb[0].mxu0
  %v584 = vadd.f32 %v511, %v583
  %v585 = vpop.f32.mrb[0].mxu0
  %586 = vmatprep.mubr.f32.mxu0 0.0
  %587 = vmatmul.mubr.f32.gmra.mrb[0].mxu0 %v472
  %v588 = vpop.f32.mrb[0].mxu0
  %v589 = vadd.f32 %v511, %v588
  %v590 = vpop.f32.mrb[0].mxu0
  %591 = vmatprep.mubr.f32.mxu0 0.0
  %592 = vmatmul.mubr.f32.gmra.mrb[0].mxu0 %v473
  %v593 = vpop.f32.mrb[0].mxu0
  %v594 = vadd.f32 %v511, %v593
  %v595 = vpop.f32.mrb[0].mxu0
  %596 = vmatprep.mubr.f32.mxu0 0.0
  %597 = vmatmul.mubr.f32.gmra.mrb[0].mxu0 %v474
  %v598 = vpop.f32.mrb[0].mxu0
  %v599 = vadd.f32 %v511, %v598
  %v600 = vpop.f32.mrb[0].mxu0
  %601 = vmatprep.mubr.f32.mxu0 0.0
  %602 = vmatmul.mubr.f32.gmra.mrb[0].mxu0 %v475
  %v603 = vpop.f32.mrb[0].mxu0
  %v604 = vadd.f32 %v511, %v603
  %v605 = vpop.f32.mrb[0].mxu0
  %606 = vmatprep.mubr.f32.mxu0 0.0
  %607 = vmatmul.mubr.f32.gmra.mrb[0].mxu0 %v476
  %v608 = vpop.f32.mrb[0].mxu0
  %v609 = vadd.f32 %v511, %v608
  %v610 = vpop.f32.mrb[0].mxu0
  %611 = vmatprep.mubr.f32.mxu0 0.0
  %612 = vmatmul.mubr.f32.gmra.mrb[0].mxu0 %v477
  %v613 = vpop.f32.mrb[0].mxu0
  %v614 = vadd.f32 %v511, %v613
  %v615 = vpop.f32.mrb[0].mxu0
  %616 = vmatprep.mubr.f32.mxu0 0.0
  %617 = vmatmul.mubr.f32.gmra.mrb[0].mxu0 %v478
  %v618 = vpop.f32.mrb[0].mxu0
  %v619 = vadd.f32 %v511, %v618
  %v620 = vpop.f32.mrb[0].mxu0
  %621 = vmatprep.mubr.f32.mxu0 0.0
  %622 = vmatmul.mubr.f32.gmra.mrb[0].mxu0 %v479
  %v623 = vpop.f32.mrb[0].mxu0
  %v624 = vadd.f32 %v511, %v623
  %v625 = vpop.f32.mrb[0].mxu0
  %626 = vmatprep.mubr.f32.mxu0 0.0
  %627 = vmatmul.mubr.f32.gmra.mrb[0].mxu0 %v480
  %v628 = vpop.f32.mrb[0].mxu0
  %v629 = vadd.f32 %v511, %v628
  %v630 = vpop.f32.mrb[0].mxu0
  %631 = vmatprep.mubr.f32.mxu0 0.0
  %632 = vmatmul.mubr.f32.gmra.mrb[0].mxu0 %v481
  %v633 = vpop.f32.mrb[0].mxu0
  %v634 = vadd.f32 %v511, %v633
  %v635 = vpop.f32.mrb[0].mxu0
  %636 = vmatprep.mubr.f32.mxu0 0.0
  %637 = vmatmul.mubr.f32.gmra.mrb[0].mxu0 %v482
  %v638 = vpop.f32.mrb[0].mxu0
  %v639 = vadd.f32 %v511, %v638
  %v640 = vpop.f32.mrb[0].mxu0
  %641 = vmatprep.mubr.f32.mxu0 0.0
  %642 = vmatmul.mubr.f32.gmra.mrb[0].mxu0 %v483
  %v643 = vpop.f32.mrb[0].mxu0
  %v644 = vadd.f32 %v511, %v643
  %v645 = vpop.f32.mrb[0].mxu0
  %646 = vmatprep.mubr.f32.mxu0 0.0
  %647 = vmatmul.mubr.f32.gmra.mrb[0].mxu0 %v484
  %v648 = vpop.f32.mrb[0].mxu0
  %v649 = vadd.f32 %v511, %v648
  %v650 = vpop.f32.mrb[0].mxu0
  %651 = vmatprep.mubr.f32.mxu0 0.0
  %652 = vmatmul.mubr.f32.gmra.mrb[0].mxu0 %v485
  %v653 = vpop.f32.mrb[0].mxu0
  %v654 = vadd.f32 %v511, %v653
  %v655 = vpop.f32.mrb[0].mxu0
  %656 = vmatprep.mubr.f32.mxu0 0.0
  %657 = vmatmul.mubr.f32.gmra.mrb[0].mxu0 %v486
  %v658 = vpop.f32.mrb[0].mxu0
  %v659 = vadd.f32 %v511, %v658
  %v660 = vpop.f32.mrb[0].mxu0
  %661 = vmatprep.mubr.f32.mxu0 0.0
  %662 = vmatmul.mubr.f32.gmra.mrb[0].mxu0 %v487
  %v663 = vpop.f32.mrb[0].mxu0
  %v664 = vadd.f32 %v511, %v663
  %v665 = vpop.f32.mrb[0].mxu0
  %666 = vmatprep.mubr.f32.mxu0 0.0
  %667 = vmatmul.mubr.f32.gmra.mrb[0].mxu0 %v488
  %v668 = vpop.f32.mrb[0].mxu0
  %v669 = vadd.f32 %v511, %v668
  %v670 = vpop.f32.mrb[0].mxu0
  %671 = vmatprep.mubr.f32.mxu0 0.0
  %672 = vmatmul.mubr.f32.gmra.mrb[0].mxu0 %v489
  %v673 = vpop.f32.mrb[0].mxu0
  %v674 = vadd.f32 %v511, %v673
  %v675 = vpop.f32.mrb[0].mxu0
  %676 = vmatprep.mubr.f32.mxu0 0.0
  %677 = vmatmul.mubr.f32.gmra.mrb[0].mxu0 %v490
  %v678 = vpop.f32.mrb[0].mxu0
  %v679 = vadd.f32 %v511, %v678
  %v680 = vpop.f32.mrb[0].mxu0
  %681 = vmatprep.mubr.f32.mxu0 0.0
  %682 = vmatmul.mubr.f32.gmra.mrb[0].mxu0 %v491
  %v683 = vpop.f32.mrb[0].mxu0
  %v684 = vadd.f32 %v511, %v683
  %v685 = vpop.f32.mrb[0].mxu0
  %686 = vmatprep.mubr.f32.mxu0 0.0
  %687 = vmatmul.mubr.f32.gmra.mrb[0].mxu0 %v492
  %v688 = vpop.f32.mrb[0].mxu0
  %v689 = vadd.f32 %v511, %v688
  %v690 = vpop.f32.mrb[0].mxu0
  %691 = vmatprep.mubr.f32.mxu0 0.0
  %692 = vmatmul.mubr.f32.gmra.mrb[0].mxu0 %v493
  %v693 = vpop.f32.mrb[0].mxu0
  %v694 = vadd.f32 %v511, %v693
  %v695 = vpop.f32.mrb[0].mxu0
  %696 = vmatprep.mubr.f32.mxu0 0.0
  %697 = vmatmul.mubr.f32.gmra.mrb[0].mxu0 %v494
  %v698 = vpop.f32.mrb[0].mxu0
  %v699 = vadd.f32 %v511, %v698
  %v700 = vpop.f32.mrb[0].mxu0
  %701 = vmatprep.mubr.f32.mxu0 0.0
  %702 = vmatmul.mubr.f32.gmra.mrb[0].mxu0 %v495
  %v703 = vpop.f32.mrb[0].mxu0
  %v704 = vadd.f32 %v511, %v703
  %v705 = vpop.f32.mrb[0].mxu0
  %706 = vmatprep.mubr.f32.mxu0 0.0
  %707 = vmatmul.mubr.f32.gmra.mrb[0].mxu0 %v496
  %v708 = vpop.f32.mrb[0].mxu0
  %v709 = vadd.f32 %v511, %v708
  %v710 = vpop.f32.mrb[0].mxu0
  %711 = vmatprep.mubr.f32.mxu0 0.0
  %712 = vmatmul.mubr.f32.gmra.mrb[0].mxu0 %v497
  %v713 = vpop.f32.mrb[0].mxu0
  %v714 = vadd.f32 %v511, %v713
  %v715 = vpop.f32.mrb[0].mxu0
  %716 = vmatprep.mubr.f32.mxu0 0.0
  %717 = vmatmul.mubr.f32.gmra.mrb[0].mxu0 %v498
  %v718 = vpop.f32.mrb[0].mxu0
  %v719 = vadd.f32 %v511, %v718
  %v720 = vpop.f32.mrb[0].mxu0
  %721 = vmatprep.mubr.f32.mxu0 0.0
  %722 = vmatmul.mubr.f32.gmra.mrb[0].mxu0 %v499
  %v723 = vpop.f32.mrb[0].mxu0
  %v724 = vadd.f32 %v511, %v723
  %v725 = vpop.f32.mrb[0].mxu0
  %726 = vmatprep.mubr.f32.mxu0 0.0
  %727 = vmatmul.mubr.f32.gmra.mrb[0].mxu0 %v500
  %v728 = vpop.f32.mrb[0].mxu0
  %v729 = vadd.f32 %v511, %v728
  %v730 = vpop.f32.mrb[0].mxu0
  %731 = vmatprep.mubr.f32.mxu0 0.0
  %732 = vmatmul.mubr.f32.gmra.mrb[0].mxu0 %v501
  %v733 = vpop.f32.mrb[0].mxu0
  %v734 = vadd.f32 %v511, %v733
  %v735 = vpop.f32.mrb[0].mxu0
  %736 = vmatprep.mubr.f32.mxu0 0.0
  %737 = vmatmul.mubr.f32.gmra.mrb[0].mxu0 %v502
  %v738 = vpop.f32.mrb[0].mxu0
  %v739 = vadd.f32 %v511, %v738
  %v740 = vpop.f32.mrb[0].mxu0
  %741 = vmatprep.mubr.f32.mxu0 0.0
  %742 = vmatmul.mubr.f32.gmra.mrb[0].mxu0 %v503
  %v743 = vpop.f32.mrb[0].mxu0
  %v744 = vadd.f32 %v511, %v743
  %v745 = vpop.f32.mrb[0].mxu0
  %746 = vmatprep.mubr.f32.mxu0 0.0
  %747 = vmatmul.mubr.f32.gmra.mrb[0].mxu0 %v504
  %v748 = vpop.f32.mrb[0].mxu0
  %v749 = vadd.f32 %v511, %v748
  %v750 = vpop.f32.mrb[0].mxu0
  %751 = vmatprep.mubr.f32.mxu0 0.0
  %752 = vmatmul.mubr.f32.gmra.mrb[0].mxu0 %v505
  %v753 = vpop.f32.mrb[0].mxu0
  %v754 = vadd.f32 %v511, %v753
  %v755 = vpop.f32.mrb[0].mxu0
  %756 = vmatprep.mubr.f32.mxu0 0.0
  %757 = vmatmul.mubr.f32.gmra.mrb[0].mxu0 %v506
  %v758 = vpop.f32.mrb[0].mxu0
  %v759 = vadd.f32 %v511, %v758
  %v760 = vpop.f32.mrb[0].mxu0
  %761 = vmatprep.mubr.f32.mxu0 0.0
  %762 = vmatmul.mubr.f32.gmra.mrb[0].mxu0 %v507
  %v763 = vpop.f32.mrb[0].mxu0
  %v764 = vadd.f32 %v511, %v763
  %v765 = vpop.f32.mrb[0].mxu0
  %766 = vdwg.mxu0
  %v767 = vmax.f32 %v579, 0.0
  %v768 = vmax.f32 %v584, 0.0
  %v769 = vmax.f32 %v589, 0.0
  %v770 = vmax.f32 %v594, 0.0
  %v771 = vmax.f32 %v599, 0.0
  %v772 = vmax.f32 %v604, 0.0
  %v773 = vmax.f32 %v609, 0.0
  %v774 = vmax.f32 %v614, 0.0
  %v775 = vmax.f32 %v619, 0.0
  %v776 = vmax.f32 %v624, 0.0
  %v777 = vmax.f32 %v629, 0.0
  %v778 = vmax.f32 %v634, 0.0
  %v779 = vmax.f32 %v639, 0.0
  %v780 = vmax.f32 %v644, 0.0
  %v781 = vmax.f32 %v649, 0.0
  %v782 = vmax.f32 %v654, 0.0
  %v783 = vmax.f32 %v659, 0.0
  %v784 = vmax.f32 %v664, 0.0
  %v785 = vmax.f32 %v669, 0.0
  %v786 = vmax.f32 %v674, 0.0
  %v787 = vmax.f32 %v679, 0.0
  %v788 = vmax.f32 %v684, 0.0
  %v789 = vmax.f32 %v689, 0.0
  %v790 = vmax.f32 %v694, 0.0
  %v791 = vmax.f32 %v699, 0.0
  %v792 = vmax.f32 %v704, 0.0
  %v793 = vmax.f32 %v709, 0.0
  %v794 = vmax.f32 %v714, 0.0
  %v795 = vmax.f32 %v719, 0.0
  %v796 = vmax.f32 %v724, 0.0
  %v797 = vmax.f32 %v729, 0.0
  %v798 = vmax.f32 %v734, 0.0
  %v799 = vmax.f32 %v739, 0.0
  %v800 = vmax.f32 %v744, 0.0
  %v801 = vmax.f32 %v749, 0.0
  %v802 = vmax.f32 %v754, 0.0
  %v803 = vmax.f32 %v759, 0.0
  %v804 = vmax.f32 %v764, 0.0
  %v805 = vlaneseq
  %v806 = vshrl.u32 %v805, 7
  %v807 = vsub.s32 0, %v806
  %v808 = vrot.slane %v91, %v807
  %809 = vmatprep.subr.mxu0 0.0
  %810 = vmatpush1.msra.mxu0 %v73
  %811 = vmatprep.subr.mxu0 0.0
  %812 = vmatpush1.msra.mxu0 %v74
  %813 = vmatprep.subr.mxu0 0.0
  %814 = vmatpush1.msra.mxu0 %v75
  %815 = vmatprep.subr.mxu0 0.0
  %816 = vmatpush1.msra.mxu0 %v76
  %817 = vmatprep.subr.mxu0 0.0
  %818 = vmatpush1.msra.mxu0 %v77
  %819 = vmatprep.subr.mxu0 0.0
  %820 = vmatpush1.msra.mxu0 %v78
  %821 = vmatprep.subr.mxu0 0.0
  %822 = vmatpush1.msra.mxu0 %v79
  %823 = vmatprep.subr.mxu0 0.0
  %824 = vmatpush1.msra.mxu0 %v80
  %825 = vmatprep.subr.mxu0 0.0
  %826 = vmatpush1.msra.mxu0 %v81
  %827 = vmatprep.subr.mxu0 0.0
  %828 = vmatpush1.msra.mxu0 %v82
  %829 = vmatprep.subr.mxu0 0.0
  %830 = vmatpush1.msra.mxu0 %v83
  %831 = vmatprep.subr.mxu0 0.0
  %832 = vmatpush1.msra.mxu0 %v84
  %833 = vmatprep.subr.mxu0 0.0
  %834 = vmatpush1.msra.mxu0 %v85
  %835 = vmatprep.subr.mxu0 0.0
  %836 = vmatpush1.msra.mxu0 %v86
  %837 = vmatprep.subr.mxu0 0.0
  %838 = vmatpush1.msra.mxu0 %v87
  %839 = vmatprep.subr.mxu0 0.0
  %840 = vmatpush1.msra.mxu0 %v88
  %841 = vmatprep.subr.mxu0 0.0
  %842 = vmatpush1.msra.mxu0 0.0
  %843 = vmatprep.subr.mxu0 0.0
  %844 = vmatpush1.msra.mxu0 0.0
  %845 = vmatprep.subr.mxu0 0.0
  %846 = vmatpush1.msra.mxu0 0.0
  %847 = vmatprep.subr.mxu0 0.0
  %848 = vmatpush1.msra.mxu0 0.0
  %849 = vmatprep.subr.mxu0 0.0
  %850 = vmatpush1.msra.mxu0 0.0
  %851 = vmatprep.subr.mxu0 0.0
  %852 = vmatpush1.msra.mxu0 0.0
  %853 = vmatprep.subr.mxu0 0.0
  %854 = vmatpush1.msra.mxu0 0.0
  %855 = vmatprep.subr.mxu0 0.0
  %856 = vmatpush1.msra.mxu0 0.0
  %857 = vmatprep.subr.mxu0 0.0
  %858 = vmatpush1.msra.mxu0 0.0
  %859 = vmatprep.subr.mxu0 0.0
  %860 = vmatpush1.msra.mxu0 0.0
  %861 = vmatprep.subr.mxu0 0.0
  %862 = vmatpush1.msra.mxu0 0.0
  %863 = vmatprep.subr.mxu0 0.0
  %864 = vmatpush1.msra.mxu0 0.0
  %865 = vmatprep.subr.mxu0 0.0
  %866 = vmatpush1.msra.mxu0 0.0
  %867 = vmatprep.subr.mxu0 0.0
  %868 = vmatpush1.msra.mxu0 0.0
  %869 = vmatprep.subr.mxu0 0.0
  %870 = vmatpush1.msra.mxu0 0.0
  %871 = vmatprep.subr.mxu0 0.0
  %872 = vmatpush1.msra.mxu0 0.0
  %873 = vmatprep.mubr.f32.mxu0 0.0
  %874 = vmatmul.mubr.f32.gmra.mrb[0].mxu0 %v767
  %v875 = vpop.f32.mrb[0].mxu0
  %v876 = vadd.f32 %v808, %v875
  %v877 = vpop.f32.mrb[0].mxu0
  %878 = vmatprep.mubr.f32.mxu0 0.0
  %879 = vmatmul.mubr.f32.gmra.mrb[0].mxu0 %v768
  %v880 = vpop.f32.mrb[0].mxu0
  %v881 = vadd.f32 %v808, %v880
  %v882 = vpop.f32.mrb[0].mxu0
  %883 = vmatprep.mubr.f32.mxu0 0.0
  %884 = vmatmul.mubr.f32.gmra.mrb[0].mxu0 %v769
  %v885 = vpop.f32.mrb[0].mxu0
  %v886 = vadd.f32 %v808, %v885
  %v887 = vpop.f32.mrb[0].mxu0
  %888 = vmatprep.mubr.f32.mxu0 0.0
  %889 = vmatmul.mubr.f32.gmra.mrb[0].mxu0 %v770
  %v890 = vpop.f32.mrb[0].mxu0
  %v891 = vadd.f32 %v808, %v890
  %v892 = vpop.f32.mrb[0].mxu0
  %893 = vmatprep.mubr.f32.mxu0 0.0
  %894 = vmatmul.mubr.f32.gmra.mrb[0].mxu0 %v771
  %v895 = vpop.f32.mrb[0].mxu0
  %v896 = vadd.f32 %v808, %v895
  %v897 = vpop.f32.mrb[0].mxu0
  %898 = vmatprep.mubr.f32.mxu0 0.0
  %899 = vmatmul.mubr.f32.gmra.mrb[0].mxu0 %v772
  %v900 = vpop.f32.mrb[0].mxu0
  %v901 = vadd.f32 %v808, %v900
  %v902 = vpop.f32.mrb[0].mxu0
  %903 = vmatprep.mubr.f32.mxu0 0.0
  %904 = vmatmul.mubr.f32.gmra.mrb[0].mxu0 %v773
  %v905 = vpop.f32.mrb[0].mxu0
  %v906 = vadd.f32 %v808, %v905
  %v907 = vpop.f32.mrb[0].mxu0
  %908 = vmatprep.mubr.f32.mxu0 0.0
  %909 = vmatmul.mubr.f32.gmra.mrb[0].mxu0 %v774
  %v910 = vpop.f32.mrb[0].mxu0
  %v911 = vadd.f32 %v808, %v910
  %v912 = vpop.f32.mrb[0].mxu0
  %913 = vmatprep.mubr.f32.mxu0 0.0
  %914 = vmatmul.mubr.f32.gmra.mrb[0].mxu0 %v775
  %v915 = vpop.f32.mrb[0].mxu0
  %v916 = vadd.f32 %v808, %v915
  %v917 = vpop.f32.mrb[0].mxu0
  %918 = vmatprep.mubr.f32.mxu0 0.0
  %919 = vmatmul.mubr.f32.gmra.mrb[0].mxu0 %v776
  %v920 = vpop.f32.mrb[0].mxu0
  %v921 = vadd.f32 %v808, %v920
  %v922 = vpop.f32.mrb[0].mxu0
  %923 = vmatprep.mubr.f32.mxu0 0.0
  %924 = vmatmul.mubr.f32.gmra.mrb[0].mxu0 %v777
  %v925 = vpop.f32.mrb[0].mxu0
  %v926 = vadd.f32 %v808, %v925
  %v927 = vpop.f32.mrb[0].mxu0
  %928 = vmatprep.mubr.f32.mxu0 0.0
  %929 = vmatmul.mubr.f32.gmra.mrb[0].mxu0 %v778
  %v930 = vpop.f32.mrb[0].mxu0
  %v931 = vadd.f32 %v808, %v930
  %v932 = vpop.f32.mrb[0].mxu0
  %933 = vmatprep.mubr.f32.mxu0 0.0
  %934 = vmatmul.mubr.f32.gmra.mrb[0].mxu0 %v779
  %v935 = vpop.f32.mrb[0].mxu0
  %v936 = vadd.f32 %v808, %v935
  %v937 = vpop.f32.mrb[0].mxu0
  %938 = vmatprep.mubr.f32.mxu0 0.0
  %939 = vmatmul.mubr.f32.gmra.mrb[0].mxu0 %v780
  %v940 = vpop.f32.mrb[0].mxu0
  %v941 = vadd.f32 %v808, %v940
  %v942 = vpop.f32.mrb[0].mxu0
  %943 = vmatprep.mubr.f32.mxu0 0.0
  %944 = vmatmul.mubr.f32.gmra.mrb[0].mxu0 %v781
  %v945 = vpop.f32.mrb[0].mxu0
  %v946 = vadd.f32 %v808, %v945
  %v947 = vpop.f32.mrb[0].mxu0
  %948 = vmatprep.mubr.f32.mxu0 0.0
  %949 = vmatmul.mubr.f32.gmra.mrb[0].mxu0 %v782
  %v950 = vpop.f32.mrb[0].mxu0
  %v951 = vadd.f32 %v808, %v950
  %v952 = vpop.f32.mrb[0].mxu0
  %953 = vmatprep.mubr.f32.mxu0 0.0
  %954 = vmatmul.mubr.f32.gmra.mrb[0].mxu0 %v783
  %v955 = vpop.f32.mrb[0].mxu0
  %v956 = vadd.f32 %v808, %v955
  %v957 = vpop.f32.mrb[0].mxu0
  %958 = vmatprep.mubr.f32.mxu0 0.0
  %959 = vmatmul.mubr.f32.gmra.mrb[0].mxu0 %v784
  %v960 = vpop.f32.mrb[0].mxu0
  %v961 = vadd.f32 %v808, %v960
  %v962 = vpop.f32.mrb[0].mxu0
  %963 = vmatprep.mubr.f32.mxu0 0.0
  %964 = vmatmul.mubr.f32.gmra.mrb[0].mxu0 %v785
  %v965 = vpop.f32.mrb[0].mxu0
  %v966 = vadd.f32 %v808, %v965
  %v967 = vpop.f32.mrb[0].mxu0
  %968 = vmatprep.mubr.f32.mxu0 0.0
  %969 = vmatmul.mubr.f32.gmra.mrb[0].mxu0 %v786
  %v970 = vpop.f32.mrb[0].mxu0
  %v971 = vadd.f32 %v808, %v970
  %v972 = vpop.f32.mrb[0].mxu0
  %973 = vmatprep.mubr.f32.mxu0 0.0
  %974 = vmatmul.mubr.f32.gmra.mrb[0].mxu0 %v787
  %v975 = vpop.f32.mrb[0].mxu0
  %v976 = vadd.f32 %v808, %v975
  %v977 = vpop.f32.mrb[0].mxu0
  %978 = vmatprep.mubr.f32.mxu0 0.0
  %979 = vmatmul.mubr.f32.gmra.mrb[0].mxu0 %v788
  %v980 = vpop.f32.mrb[0].mxu0
  %v981 = vadd.f32 %v808, %v980
  %v982 = vpop.f32.mrb[0].mxu0
  %983 = vmatprep.mubr.f32.mxu0 0.0
  %984 = vmatmul.mubr.f32.gmra.mrb[0].mxu0 %v789
  %v985 = vpop.f32.mrb[0].mxu0
  %v986 = vadd.f32 %v808, %v985
  %v987 = vpop.f32.mrb[0].mxu0
  %988 = vmatprep.mubr.f32.mxu0 0.0
  %989 = vmatmul.mubr.f32.gmra.mrb[0].mxu0 %v790
  %v990 = vpop.f32.mrb[0].mxu0
  %v991 = vadd.f32 %v808, %v990
  %v992 = vpop.f32.mrb[0].mxu0
  %993 = vmatprep.mubr.f32.mxu0 0.0
  %994 = vmatmul.mubr.f32.gmra.mrb[0].mxu0 %v791
  %v995 = vpop.f32.mrb[0].mxu0
  %v996 = vadd.f32 %v808, %v995
  %v997 = vpop.f32.mrb[0].mxu0
  %998 = vmatprep.mubr.f32.mxu0 0.0
  %999 = vmatmul.mubr.f32.gmra.mrb[0].mxu0 %v792
  %v1000 = vpop.f32.mrb[0].mxu0
  %v1001 = vadd.f32 %v808, %v1000
  %v1002 = vpop.f32.mrb[0].mxu0
  %1003 = vmatprep.mubr.f32.mxu0 0.0
  %1004 = vmatmul.mubr.f32.gmra.mrb[0].mxu0 %v793
  %v1005 = vpop.f32.mrb[0].mxu0
  %v1006 = vadd.f32 %v808, %v1005
  %v1007 = vpop.f32.mrb[0].mxu0
  %1008 = vmatprep.mubr.f32.mxu0 0.0
  %1009 = vmatmul.mubr.f32.gmra.mrb[0].mxu0 %v794
  %v1010 = vpop.f32.mrb[0].mxu0
  %v1011 = vadd.f32 %v808, %v1010
  %v1012 = vpop.f32.mrb[0].mxu0
  %1013 = vmatprep.mubr.f32.mxu0 0.0
  %1014 = vmatmul.mubr.f32.gmra.mrb[0].mxu0 %v795
  %v1015 = vpop.f32.mrb[0].mxu0
  %v1016 = vadd.f32 %v808, %v1015
  %v1017 = vpop.f32.mrb[0].mxu0
  %1018 = vmatprep.mubr.f32.mxu0 0.0
  %1019 = vmatmul.mubr.f32.gmra.mrb[0].mxu0 %v796
  %v1020 = vpop.f32.mrb[0].mxu0
  %v1021 = vadd.f32 %v808, %v1020
  %v1022 = vpop.f32.mrb[0].mxu0
  %1023 = vmatprep.mubr.f32.mxu0 0.0
  %1024 = vmatmul.mubr.f32.gmra.mrb[0].mxu0 %v797
  %v1025 = vpop.f32.mrb[0].mxu0
  %v1026 = vadd.f32 %v808, %v1025
  %v1027 = vpop.f32.mrb[0].mxu0
  %1028 = vmatprep.mubr.f32.mxu0 0.0
  %1029 = vmatmul.mubr.f32.gmra.mrb[0].mxu0 %v798
  %v1030 = vpop.f32.mrb[0].mxu0
  %v1031 = vadd.f32 %v808, %v1030
  %v1032 = vpop.f32.mrb[0].mxu0
  %1033 = vmatprep.mubr.f32.mxu0 0.0
  %1034 = vmatmul.mubr.f32.gmra.mrb[0].mxu0 %v799
  %v1035 = vpop.f32.mrb[0].mxu0
  %v1036 = vadd.f32 %v808, %v1035
  %v1037 = vpop.f32.mrb[0].mxu0
  %1038 = vmatprep.mubr.f32.mxu0 0.0
  %1039 = vmatmul.mubr.f32.gmra.mrb[0].mxu0 %v800
  %v1040 = vpop.f32.mrb[0].mxu0
  %v1041 = vadd.f32 %v808, %v1040
  %v1042 = vpop.f32.mrb[0].mxu0
  %1043 = vmatprep.mubr.f32.mxu0 0.0
  %1044 = vmatmul.mubr.f32.gmra.mrb[0].mxu0 %v801
  %v1045 = vpop.f32.mrb[0].mxu0
  %v1046 = vadd.f32 %v808, %v1045
  %v1047 = vpop.f32.mrb[0].mxu0
  %1048 = vmatprep.mubr.f32.mxu0 0.0
  %1049 = vmatmul.mubr.f32.gmra.mrb[0].mxu0 %v802
  %v1050 = vpop.f32.mrb[0].mxu0
  %v1051 = vadd.f32 %v808, %v1050
  %v1052 = vpop.f32.mrb[0].mxu0
  %1053 = vmatprep.mubr.f32.mxu0 0.0
  %1054 = vmatmul.mubr.f32.gmra.mrb[0].mxu0 %v803
  %v1055 = vpop.f32.mrb[0].mxu0
  %v1056 = vadd.f32 %v808, %v1055
  %v1057 = vpop.f32.mrb[0].mxu0
  %1058 = vmatprep.mubr.f32.mxu0 0.0
  %1059 = vmatmul.mubr.f32.gmra.mrb[0].mxu0 %v804
  %v1060 = vpop.f32.mrb[0].mxu0
  %v1061 = vadd.f32 %v808, %v1060
  %v1062 = vpop.f32.mrb[0].mxu0
  %1063 = vdwg.mxu0
  %1064 = vmax.xlane.f32.xlu0 %v876
  %v1065 = vpop.xlane.xlu0 %1064
  %1066 = vmax.xlane.f32.xlu0 %v881
  %v1067 = vpop.xlane.xlu0 %1066
  %1068 = vmax.xlane.f32.xlu0 %v886
  %v1069 = vpop.xlane.xlu0 %1068
  %1070 = vmax.xlane.f32.xlu0 %v891
  %v1071 = vpop.xlane.xlu0 %1070
  %1072 = vmax.xlane.f32.xlu0 %v896
  %v1073 = vpop.xlane.xlu0 %1072
  %1074 = vmax.xlane.f32.xlu0 %v901
  %v1075 = vpop.xlane.xlu0 %1074
  %1076 = vmax.xlane.f32.xlu0 %v906
  %v1077 = vpop.xlane.xlu0 %1076
  %1078 = vmax.xlane.f32.xlu0 %v911
  %v1079 = vpop.xlane.xlu0 %1078
  %1080 = vmax.xlane.f32.xlu0 %v916
  %v1081 = vpop.xlane.xlu0 %1080
  %1082 = vmax.xlane.f32.xlu0 %v921
  %v1083 = vpop.xlane.xlu0 %1082
  %1084 = vmax.xlane.f32.xlu0 %v926
  %v1085 = vpop.xlane.xlu0 %1084
  %1086 = vmax.xlane.f32.xlu0 %v931
  %v1087 = vpop.xlane.xlu0 %1086
  %1088 = vmax.xlane.f32.xlu0 %v936
  %v1089 = vpop.xlane.xlu0 %1088
  %1090 = vmax.xlane.f32.xlu0 %v941
  %v1091 = vpop.xlane.xlu0 %1090
  %1092 = vmax.xlane.f32.xlu0 %v946
  %v1093 = vpop.xlane.xlu0 %1092
  %1094 = vmax.xlane.f32.xlu0 %v951
  %v1095 = vpop.xlane.xlu0 %1094
  %1096 = vmax.xlane.f32.xlu0 %v956
  %v1097 = vpop.xlane.xlu0 %1096
  %1098 = vmax.xlane.f32.xlu0 %v961
  %v1099 = vpop.xlane.xlu0 %1098
  %1100 = vmax.xlane.f32.xlu0 %v966
  %v1101 = vpop.xlane.xlu0 %1100
  %1102 = vmax.xlane.f32.xlu0 %v971
  %v1103 = vpop.xlane.xlu0 %1102
  %1104 = vmax.xlane.f32.xlu0 %v976
  %v1105 = vpop.xlane.xlu0 %1104
  %1106 = vmax.xlane.f32.xlu0 %v981
  %v1107 = vpop.xlane.xlu0 %1106
  %1108 = vmax.xlane.f32.xlu0 %v986
  %v1109 = vpop.xlane.xlu0 %1108
  %1110 = vmax.xlane.f32.xlu0 %v991
  %v1111 = vpop.xlane.xlu0 %1110
  %1112 = vmax.xlane.f32.xlu0 %v996
  %v1113 = vpop.xlane.xlu0 %1112
  %1114 = vmax.xlane.f32.xlu0 %v1001
  %v1115 = vpop.xlane.xlu0 %1114
  %1116 = vmax.xlane.f32.xlu0 %v1006
  %v1117 = vpop.xlane.xlu0 %1116
  %1118 = vmax.xlane.f32.xlu0 %v1011
  %v1119 = vpop.xlane.xlu0 %1118
  %1120 = vmax.xlane.f32.xlu0 %v1016
  %v1121 = vpop.xlane.xlu0 %1120
  %1122 = vmax.xlane.f32.xlu0 %v1021
  %v1123 = vpop.xlane.xlu0 %1122
  %1124 = vmax.xlane.f32.xlu0 %v1026
  %v1125 = vpop.xlane.xlu0 %1124
  %1126 = vmax.xlane.f32.xlu0 %v1031
  %v1127 = vpop.xlane.xlu0 %1126
  %1128 = vmax.xlane.f32.xlu0 %v1036
  %v1129 = vpop.xlane.xlu0 %1128
  %1130 = vmax.xlane.f32.xlu0 %v1041
  %v1131 = vpop.xlane.xlu0 %1130
  %1132 = vmax.xlane.f32.xlu0 %v1046
  %v1133 = vpop.xlane.xlu0 %1132
  %1134 = vmax.xlane.f32.xlu0 %v1051
  %v1135 = vpop.xlane.xlu0 %1134
  %1136 = vmax.xlane.f32.xlu0 %v1056
  %v1137 = vpop.xlane.xlu0 %1136
  %1138 = vmax.xlane.f32.xlu0 %v1061
  %v1139 = vpop.xlane.xlu0 %1138
  %v1140 = vsub.f32 %v876, %v1065
  %v1141 = vsub.f32 %v881, %v1067
  %v1142 = vsub.f32 %v886, %v1069
  %v1143 = vsub.f32 %v891, %v1071
  %v1144 = vsub.f32 %v896, %v1073
  %v1145 = vsub.f32 %v901, %v1075
  %v1146 = vsub.f32 %v906, %v1077
  %v1147 = vsub.f32 %v911, %v1079
  %v1148 = vsub.f32 %v916, %v1081
  %v1149 = vsub.f32 %v921, %v1083
  %v1150 = vsub.f32 %v926, %v1085
  %v1151 = vsub.f32 %v931, %v1087
  %v1152 = vsub.f32 %v936, %v1089
  %v1153 = vsub.f32 %v941, %v1091
  %v1154 = vsub.f32 %v946, %v1093
  %v1155 = vsub.f32 %v951, %v1095
  %v1156 = vsub.f32 %v956, %v1097
  %v1157 = vsub.f32 %v961, %v1099
  %v1158 = vsub.f32 %v966, %v1101
  %v1159 = vsub.f32 %v971, %v1103
  %v1160 = vsub.f32 %v976, %v1105
  %v1161 = vsub.f32 %v981, %v1107
  %v1162 = vsub.f32 %v986, %v1109
  %v1163 = vsub.f32 %v991, %v1111
  %v1164 = vsub.f32 %v996, %v1113
  %v1165 = vsub.f32 %v1001, %v1115
  %v1166 = vsub.f32 %v1006, %v1117
  %v1167 = vsub.f32 %v1011, %v1119
  %v1168 = vsub.f32 %v1016, %v1121
  %v1169 = vsub.f32 %v1021, %v1123
  %v1170 = vsub.f32 %v1026, %v1125
  %v1171 = vsub.f32 %v1031, %v1127
  %v1172 = vsub.f32 %v1036, %v1129
  %v1173 = vsub.f32 %v1041, %v1131
  %v1174 = vsub.f32 %v1046, %v1133
  %v1175 = vsub.f32 %v1051, %v1135
  %v1176 = vsub.f32 %v1056, %v1137
  %v1177 = vsub.f32 %v1061, %v1139
  %v1178 = vmul.f32 %v1140, 1.442695
  %v1179 = vpow.pop %v1178
  %v1180 = vmul.f32 %v1141, 1.442695
  %v1181 = vpow.pop %v1180
  %v1182 = vmul.f32 %v1142, 1.442695
  %v1183 = vpow.pop %v1182
  %v1184 = vmul.f32 %v1143, 1.442695
  %v1185 = vpow.pop %v1184
  %v1186 = vmul.f32 %v1144, 1.442695
  %v1187 = vpow.pop %v1186
  %v1188 = vmul.f32 %v1145, 1.442695
  %v1189 = vpow.pop %v1188
  %v1190 = vmul.f32 %v1146, 1.442695
  %v1191 = vpow.pop %v1190
  %v1192 = vmul.f32 %v1147, 1.442695
  %v1193 = vpow.pop %v1192
  %v1194 = vmul.f32 %v1148, 1.442695
  %v1195 = vpow.pop %v1194
  %v1196 = vmul.f32 %v1149, 1.442695
  %v1197 = vpow.pop %v1196
  %v1198 = vmul.f32 %v1150, 1.442695
  %v1199 = vpow.pop %v1198
  %v1200 = vmul.f32 %v1151, 1.442695
  %v1201 = vpow.pop %v1200
  %v1202 = vmul.f32 %v1152, 1.442695
  %v1203 = vpow.pop %v1202
  %v1204 = vmul.f32 %v1153, 1.442695
  %v1205 = vpow.pop %v1204
  %v1206 = vmul.f32 %v1154, 1.442695
  %v1207 = vpow.pop %v1206
  %v1208 = vmul.f32 %v1155, 1.442695
  %v1209 = vpow.pop %v1208
  %v1210 = vmul.f32 %v1156, 1.442695
  %v1211 = vpow.pop %v1210
  %v1212 = vmul.f32 %v1157, 1.442695
  %v1213 = vpow.pop %v1212
  %v1214 = vmul.f32 %v1158, 1.442695
  %v1215 = vpow.pop %v1214
  %v1216 = vmul.f32 %v1159, 1.442695
  %v1217 = vpow.pop %v1216
  %v1218 = vmul.f32 %v1160, 1.442695
  %v1219 = vpow.pop %v1218
  %v1220 = vmul.f32 %v1161, 1.442695
  %v1221 = vpow.pop %v1220
  %v1222 = vmul.f32 %v1162, 1.442695
  %v1223 = vpow.pop %v1222
  %v1224 = vmul.f32 %v1163, 1.442695
  %v1225 = vpow.pop %v1224
  %v1226 = vmul.f32 %v1164, 1.442695
  %v1227 = vpow.pop %v1226
  %v1228 = vmul.f32 %v1165, 1.442695
  %v1229 = vpow.pop %v1228
  %v1230 = vmul.f32 %v1166, 1.442695
  %v1231 = vpow.pop %v1230
  %v1232 = vmul.f32 %v1167, 1.442695
  %v1233 = vpow.pop %v1232
  %v1234 = vmul.f32 %v1168, 1.442695
  %v1235 = vpow.pop %v1234
  %v1236 = vmul.f32 %v1169, 1.442695
  %v1237 = vpow.pop %v1236
  %v1238 = vmul.f32 %v1170, 1.442695
  %v1239 = vpow.pop %v1238
  %v1240 = vmul.f32 %v1171, 1.442695
  %v1241 = vpow.pop %v1240
  %v1242 = vmul.f32 %v1172, 1.442695
  %v1243 = vpow.pop %v1242
  %v1244 = vmul.f32 %v1173, 1.442695
  %v1245 = vpow.pop %v1244
  %v1246 = vmul.f32 %v1174, 1.442695
  %v1247 = vpow.pop %v1246
  %v1248 = vmul.f32 %v1175, 1.442695
  %v1249 = vpow.pop %v1248
  %v1250 = vmul.f32 %v1176, 1.442695
  %v1251 = vpow.pop %v1250
  %v1252 = vmul.f32 %v1177, 1.442695
  %v1253 = vpow.pop %v1252
  %1254 = vadd.xlane.f32.xlu0 %v1179
  %v1255 = vpop.xlane.xlu0 %1254
  %1256 = vadd.xlane.f32.xlu0 %v1181
  %v1257 = vpop.xlane.xlu0 %1256
  %1258 = vadd.xlane.f32.xlu0 %v1183
  %v1259 = vpop.xlane.xlu0 %1258
  %1260 = vadd.xlane.f32.xlu0 %v1185
  %v1261 = vpop.xlane.xlu0 %1260
  %1262 = vadd.xlane.f32.xlu0 %v1187
  %v1263 = vpop.xlane.xlu0 %1262
  %1264 = vadd.xlane.f32.xlu0 %v1189
  %v1265 = vpop.xlane.xlu0 %1264
  %1266 = vadd.xlane.f32.xlu0 %v1191
  %v1267 = vpop.xlane.xlu0 %1266
  %1268 = vadd.xlane.f32.xlu0 %v1193
  %v1269 = vpop.xlane.xlu0 %1268
  %1270 = vadd.xlane.f32.xlu0 %v1195
  %v1271 = vpop.xlane.xlu0 %1270
  %1272 = vadd.xlane.f32.xlu0 %v1197
  %v1273 = vpop.xlane.xlu0 %1272
  %1274 = vadd.xlane.f32.xlu0 %v1199
  %v1275 = vpop.xlane.xlu0 %1274
  %1276 = vadd.xlane.f32.xlu0 %v1201
  %v1277 = vpop.xlane.xlu0 %1276
  %1278 = vadd.xlane.f32.xlu0 %v1203
  %v1279 = vpop.xlane.xlu0 %1278
  %1280 = vadd.xlane.f32.xlu0 %v1205
  %v1281 = vpop.xlane.xlu0 %1280
  %1282 = vadd.xlane.f32.xlu0 %v1207
  %v1283 = vpop.xlane.xlu0 %1282
  %1284 = vadd.xlane.f32.xlu0 %v1209
  %v1285 = vpop.xlane.xlu0 %1284
  %1286 = vadd.xlane.f32.xlu0 %v1211
  %v1287 = vpop.xlane.xlu0 %1286
  %1288 = vadd.xlane.f32.xlu0 %v1213
  %v1289 = vpop.xlane.xlu0 %1288
  %1290 = vadd.xlane.f32.xlu0 %v1215
  %v1291 = vpop.xlane.xlu0 %1290
  %1292 = vadd.xlane.f32.xlu0 %v1217
  %v1293 = vpop.xlane.xlu0 %1292
  %1294 = vadd.xlane.f32.xlu0 %v1219
  %v1295 = vpop.xlane.xlu0 %1294
  %1296 = vadd.xlane.f32.xlu0 %v1221
  %v1297 = vpop.xlane.xlu0 %1296
  %1298 = vadd.xlane.f32.xlu0 %v1223
  %v1299 = vpop.xlane.xlu0 %1298
  %1300 = vadd.xlane.f32.xlu0 %v1225
  %v1301 = vpop.xlane.xlu0 %1300
  %1302 = vadd.xlane.f32.xlu0 %v1227
  %v1303 = vpop.xlane.xlu0 %1302
  %1304 = vadd.xlane.f32.xlu0 %v1229
  %v1305 = vpop.xlane.xlu0 %1304
  %1306 = vadd.xlane.f32.xlu0 %v1231
  %v1307 = vpop.xlane.xlu0 %1306
  %1308 = vadd.xlane.f32.xlu0 %v1233
  %v1309 = vpop.xlane.xlu0 %1308
  %1310 = vadd.xlane.f32.xlu0 %v1235
  %v1311 = vpop.xlane.xlu0 %1310
  %1312 = vadd.xlane.f32.xlu0 %v1237
  %v1313 = vpop.xlane.xlu0 %1312
  %1314 = vadd.xlane.f32.xlu0 %v1239
  %v1315 = vpop.xlane.xlu0 %1314
  %1316 = vadd.xlane.f32.xlu0 %v1241
  %v1317 = vpop.xlane.xlu0 %1316
  %1318 = vadd.xlane.f32.xlu0 %v1243
  %v1319 = vpop.xlane.xlu0 %1318
  %1320 = vadd.xlane.f32.xlu0 %v1245
  %v1321 = vpop.xlane.xlu0 %1320
  %1322 = vadd.xlane.f32.xlu0 %v1247
  %v1323 = vpop.xlane.xlu0 %1322
  %1324 = vadd.xlane.f32.xlu0 %v1249
  %v1325 = vpop.xlane.xlu0 %1324
  %1326 = vadd.xlane.f32.xlu0 %v1251
  %v1327 = vpop.xlane.xlu0 %1326
  %1328 = vadd.xlane.f32.xlu0 %v1253
  %v1329 = vpop.xlane.xlu0 %1328
  %v1330 = vrcp.pop %v1255
  %v1331 = vmul.f32 %v1179, %v1330
  %v1332 = vrcp.pop %v1257
  %v1333 = vmul.f32 %v1181, %v1332
  %v1334 = vrcp.pop %v1259
  %v1335 = vmul.f32 %v1183, %v1334
  %v1336 = vrcp.pop %v1261
  %v1337 = vmul.f32 %v1185, %v1336
  %v1338 = vrcp.pop %v1263
  %v1339 = vmul.f32 %v1187, %v1338
  %v1340 = vrcp.pop %v1265
  %v1341 = vmul.f32 %v1189, %v1340
  %v1342 = vrcp.pop %v1267
  %v1343 = vmul.f32 %v1191, %v1342
  %v1344 = vrcp.pop %v1269
  %v1345 = vmul.f32 %v1193, %v1344
  %v1346 = vrcp.pop %v1271
  %v1347 = vmul.f32 %v1195, %v1346
  %v1348 = vrcp.pop %v1273
  %v1349 = vmul.f32 %v1197, %v1348
  %v1350 = vrcp.pop %v1275
  %v1351 = vmul.f32 %v1199, %v1350
  %v1352 = vrcp.pop %v1277
  %v1353 = vmul.f32 %v1201, %v1352
  %v1354 = vrcp.pop %v1279
  %v1355 = vmul.f32 %v1203, %v1354
  %v1356 = vrcp.pop %v1281
  %v1357 = vmul.f32 %v1205, %v1356
  %v1358 = vrcp.pop %v1283
  %v1359 = vmul.f32 %v1207, %v1358
  %v1360 = vrcp.pop %v1285
  %v1361 = vmul.f32 %v1209, %v1360
  %v1362 = vrcp.pop %v1287
  %v1363 = vmul.f32 %v1211, %v1362
  %v1364 = vrcp.pop %v1289
  %v1365 = vmul.f32 %v1213, %v1364
  %v1366 = vrcp.pop %v1291
  %v1367 = vmul.f32 %v1215, %v1366
  %v1368 = vrcp.pop %v1293
  %v1369 = vmul.f32 %v1217, %v1368
  %v1370 = vrcp.pop %v1295
  %v1371 = vmul.f32 %v1219, %v1370
  %v1372 = vrcp.pop %v1297
  %v1373 = vmul.f32 %v1221, %v1372
  %v1374 = vrcp.pop %v1299
  %v1375 = vmul.f32 %v1223, %v1374
  %v1376 = vrcp.pop %v1301
  %v1377 = vmul.f32 %v1225, %v1376
  %v1378 = vrcp.pop %v1303
  %v1379 = vmul.f32 %v1227, %v1378
  %v1380 = vrcp.pop %v1305
  %v1381 = vmul.f32 %v1229, %v1380
  %v1382 = vrcp.pop %v1307
  %v1383 = vmul.f32 %v1231, %v1382
  %v1384 = vrcp.pop %v1309
  %v1385 = vmul.f32 %v1233, %v1384
  %v1386 = vrcp.pop %v1311
  %v1387 = vmul.f32 %v1235, %v1386
  %v1388 = vrcp.pop %v1313
  %v1389 = vmul.f32 %v1237, %v1388
  %v1390 = vrcp.pop %v1315
  %v1391 = vmul.f32 %v1239, %v1390
  %v1392 = vrcp.pop %v1317
  %v1393 = vmul.f32 %v1241, %v1392
  %v1394 = vrcp.pop %v1319
  %v1395 = vmul.f32 %v1243, %v1394
  %v1396 = vrcp.pop %v1321
  %v1397 = vmul.f32 %v1245, %v1396
  %v1398 = vrcp.pop %v1323
  %v1399 = vmul.f32 %v1247, %v1398
  %v1400 = vrcp.pop %v1325
  %v1401 = vmul.f32 %v1249, %v1400
  %v1402 = vrcp.pop %v1327
  %v1403 = vmul.f32 %v1251, %v1402
  %v1404 = vrcp.pop %v1329
  %v1405 = vmul.f32 %v1253, %v1404
  %vm1406 = vcmask 15360
  %1407 = vst.msk [vmem:[%s4] sm:$0xff] %vm1406, %v1331
  %1408 = vst.msk [vmem:[%s4 + $0x8] sm:$0xff] %vm1406, %v1333
  %1409 = vst.msk [vmem:[%s4 + $0x10] sm:$0xff] %vm1406, %v1335
  %1410 = vst.msk [vmem:[%s4 + $0x18] sm:$0xff] %vm1406, %v1337
  %1411 = vst.msk [vmem:[%s4 + $0x20] sm:$0xff] %vm1406, %v1339
  %1412 = vst.msk [vmem:[%s4 + $0x28] sm:$0xff] %vm1406, %v1341
  %1413 = vst.msk [vmem:[%s4 + $0x30] sm:$0xff] %vm1406, %v1343
  %1414 = vst.msk [vmem:[%s4 + $0x38] sm:$0xff] %vm1406, %v1345
  %1415 = vst.msk [vmem:[%s4 + $0x40] sm:$0xff] %vm1406, %v1347
  %1416 = vst.msk [vmem:[%s4 + $0x48] sm:$0xff] %vm1406, %v1349
  %1417 = vst.msk [vmem:[%s4 + $0x50] sm:$0xff] %vm1406, %v1351
  %1418 = vst.msk [vmem:[%s4 + $0x58] sm:$0xff] %vm1406, %v1353
  %1419 = vst.msk [vmem:[%s4 + $0x60] sm:$0xff] %vm1406, %v1355
  %1420 = vst.msk [vmem:[%s4 + $0x68] sm:$0xff] %vm1406, %v1357
  %1421 = vst.msk [vmem:[%s4 + $0x70] sm:$0xff] %vm1406, %v1359
  %1422 = vst.msk [vmem:[%s4 + $0x78] sm:$0xff] %vm1406, %v1361
  %1423 = vst.msk [vmem:[%s4 + $0x80] sm:$0xff] %vm1406, %v1363
  %1424 = vst.msk [vmem:[%s4 + $0x88] sm:$0xff] %vm1406, %v1365
  %1425 = vst.msk [vmem:[%s4 + $0x90] sm:$0xff] %vm1406, %v1367
  %1426 = vst.msk [vmem:[%s4 + $0x98] sm:$0xff] %vm1406, %v1369
  %1427 = vst.msk [vmem:[%s4 + $0xa0] sm:$0xff] %vm1406, %v1371
  %1428 = vst.msk [vmem:[%s4 + $0xa8] sm:$0xff] %vm1406, %v1373
  %1429 = vst.msk [vmem:[%s4 + $0xb0] sm:$0xff] %vm1406, %v1375
  %1430 = vst.msk [vmem:[%s4 + $0xb8] sm:$0xff] %vm1406, %v1377
  %1431 = vst.msk [vmem:[%s4 + $0xc0] sm:$0xff] %vm1406, %v1379
  %1432 = vst.msk [vmem:[%s4 + $0xc8] sm:$0xff] %vm1406, %v1381
  %1433 = vst.msk [vmem:[%s4 + $0xd0] sm:$0xff] %vm1406, %v1383
  %1434 = vst.msk [vmem:[%s4 + $0xd8] sm:$0xff] %vm1406, %v1385
  %1435 = vst.msk [vmem:[%s4 + $0xe0] sm:$0xff] %vm1406, %v1387
  %1436 = vst.msk [vmem:[%s4 + $0xe8] sm:$0xff] %vm1406, %v1389
  %1437 = vst.msk [vmem:[%s4 + $0xf0] sm:$0xff] %vm1406, %v1391
  %1438 = vst.msk [vmem:[%s4 + $0xf8] sm:$0xff] %vm1406, %v1393
  %1439 = vst.msk [vmem:[%s4 + $0x100] sm:$0xff] %vm1406, %v1395
  %1440 = vst.msk [vmem:[%s4 + $0x108] sm:$0xff] %vm1406, %v1397
  %1441 = vst.msk [vmem:[%s4 + $0x110] sm:$0xff] %vm1406, %v1399
  %1442 = vst.msk [vmem:[%s4 + $0x118] sm:$0xff] %vm1406, %v1401
  %1443 = vst.msk [vmem:[%s4 + $0x120] sm:$0xff] %vm1406, %v1403
  %1444 = vst.msk [vmem:[%s4 + $0x128] sm:$0xff] %vm1406, %v1405
  // Predicated region
  $region18: #{tpu_custom_call.1} parent=0 // pred_check
    _
  $region19: #{tpu_custom_call.1} parent=0 // pred_check_branch
    %1446 = sbr.rel (0) target = $region21
  $region20: #{tpu_custom_call.1} parent=0 // pred_region
    _
  $region21: #{tpu_custom_call.1} parent=0 // pred_fallthru
    _
  // Predicated region
  $region22: #{tpu_custom_call.1} parent=0 // pred_check
    _
  $region23: #{tpu_custom_call.1} parent=0 // pred_check_branch
    %1448 = sbr.rel (0) target = $region25
  $region24: #{tpu_custom_call.1} parent=0 // pred_region
    _
  $region25: #{tpu_custom_call.1} parent=0 // pred_fallthru
    _

</llo_original>
